<compile_context>
chip_gen: v7x
topology: tpu7x:2x2x1
jax: 0.10.0
libtpu: 0.0.40
codegen_flags: <defaults>
</compile_context>

<pallas_src>
import functools

import jax
import jax.numpy as jnp
from jax.experimental import pallas as pl
from jax.experimental.pallas import tpu as pltpu


def _round_up(n, m):
    return ((n + m - 1) // m) * m


def _lstm_recurrence_kernel(lens_ref, xproj_ref, whh_ref, y_ref, h_scr, c_scr,
                            *, hidden_pad, time_block):
    """One grid step = `time_block` LSTM time steps for one batch block.

    Tiles are time-major: xproj_ref (TB, BB, 4Hp) bf16, y_ref (TB, BB, Hp) f32.
    h/c are carried across the (innermost) time grid axis in VMEM scratch.
    """
    tb = pl.program_id(1)

    # New batch block (time index restarts) -> zero-init the carried state.
    @pl.when(tb == 0)
    def _():
        h_scr[...] = jnp.zeros_like(h_scr)
        c_scr[...] = jnp.zeros_like(c_scr)

    Hp = hidden_pad
    lens = lens_ref[...]                       # (BB, 1) int32
    t_base = tb * time_block

    whh = whh_ref[...]                         # (Hp, 4Hp) bf16, hoisted out of loop
    h = h_scr[...]                             # (BB, Hp) f32
    c = c_scr[...]                             # (BB, Hp) f32

    # Static, fully-unrolled inner time loop (TB is small and compile-time).
    for s in range(time_block):
        x_t = xproj_ref[s].astype(jnp.float32)         # (BB, 4Hp) contiguous slab
        gates = x_t + jnp.dot(h.astype(jnp.bfloat16), whh,
                              preferred_element_type=jnp.float32)
        # Gate order (i, f, o, g): one wide sigmoid over 3Hp lanes, one tanh.
        sig = jax.nn.sigmoid(gates[:, 0:3 * Hp])
        i_g = sig[:, 0 * Hp:1 * Hp]
        f_g = sig[:, 1 * Hp:2 * Hp]
        o_g = sig[:, 2 * Hp:3 * Hp]
        g_g = jnp.tanh(gates[:, 3 * Hp:4 * Hp])
        c = f_g * c + i_g * g_g
        h = o_g * jnp.tanh(c)

        # Packed-sequence semantics: outputs past each sequence length are 0.
        valid = (t_base + s) < lens                    # (BB, 1) -> broadcasts over Hp
        y_ref[s] = jnp.where(valid, h, 0.0).astype(y_ref.dtype)

    h_scr[...] = h
    c_scr[...] = c


def dynamic_lstm_pallas(x, seq_lens, params, *, time_block=16, batch_block=128):
    """x: [B, T, D] float32, seq_lens: [B] int32.  Returns [B, T, H] float32."""
    B, T, D = x.shape
    w_ih, w_hh, b_ih, b_hh = params            # [4H,D], [4H,H], [4H], [4H]
    H = w_hh.shape[1]
    f32, bf16 = jnp.float32, jnp.bfloat16

    Hp = _round_up(H, 128)                     # lane-aligned hidden width
    BB = min(batch_block, _round_up(B, 8))     # full sublanes; clamp for small B
    TB = min(time_block, _round_up(T, 8))
    # TODO(synk): for v7x, keep Bp // BB >= 2 at large B so the parallel batch
    # axis shards across both TensorCores.
    Bp = _round_up(B, BB)
    Tp = _round_up(T, TB)
    G = 4 * Hp

    # ---- Pad weights per-gate so each gate occupies a lane-aligned Hp span,
    # reordering PyTorch's (i, f, g, o) -> (i, f, o, g) so the three sigmoids
    # are contiguous.  Padded gate lanes see zero weights/bias -> padded h/c
    # lanes stay exactly 0 (i=f=o=0.5, g=0 => c,h stay 0).
    perm = jnp.array([0, 1, 3, 2], dtype=jnp.int32)

    def pad_gate_rows(w):                      # (4H, X) -> (4Hp, X)
        w4 = w.reshape(4, H, -1)[perm]
        return jnp.pad(w4, ((0, 0), (0, Hp - H), (0, 0))).reshape(4 * Hp, -1)

    w_ih_p = pad_gate_rows(w_ih.astype(f32))                        # (4Hp, D)
    w_hh_p = pad_gate_rows(w_hh.astype(f32))                        # (4Hp, H)
    w_hh_p = jnp.pad(w_hh_p, ((0, 0), (0, Hp - H)))                 # (4Hp, Hp)
    whh_t = jnp.transpose(w_hh_p, (1, 0)).astype(bf16)              # (Hp, 4Hp) bf16
    bias = jnp.pad(((b_ih + b_hh).astype(f32).reshape(4, H))[perm],
                   ((0, 0), (0, Hp - H))).reshape(1, G)             # (1, 4Hp) f32

    # ---- Hoisted input projection: ONE big matmul over all (batch, time),
    # bias folded in, produced TIME-MAJOR and stored in bf16.  Only the
    # h-recurrence remains inside the serial loop.
    x_p = jnp.pad(x.astype(f32), ((0, Bp - B), (0, Tp - T), (0, 0)))   # (Bp,Tp,D)
    x_tm = jnp.transpose(x_p, (1, 0, 2)).astype(bf16)                  # (Tp,Bp,D)
    w_ih_t = jnp.transpose(w_ih_p, (1, 0)).astype(bf16)                # (D, 4Hp)
    x_proj = (jnp.dot(x_tm.reshape(Tp * Bp, D), w_ih_t,
                      preferred_element_type=f32) + bias)
    x_proj = x_proj.astype(bf16).reshape(Tp, Bp, G)                    # (Tp,Bp,4Hp)

    lens_p = jnp.pad(seq_lens.astype(jnp.int32), (0, Bp - B)).reshape(Bp, 1)

    kernel = functools.partial(_lstm_recurrence_kernel,
                               hidden_pad=Hp, time_block=TB)

    # VMEM budget (double-buffered tiles + resident weights + scratch), capped
    # at 64 MiB so the same setting is valid on v7x; floor at the 32 MiB default.
    vmem_need = (2 * TB * BB * G * 2          # x_proj blocks (bf16)
                 + 2 * TB * BB * Hp * 4       # y blocks (f32)
                 + 2 * Hp * G * 2             # W_hh^T (bf16)
                 + 2 * BB * Hp * 4            # h/c scratch
                 + 2 * BB * 4)                # lens
    vmem_limit = int(min(max(2 * vmem_need, 32 * 1024 * 1024), 64 * 1024 * 1024))

    y_pad = pl.pallas_call(
        kernel,
        out_shape=jax.ShapeDtypeStruct((Tp, Bp, Hp), f32),
        grid_spec=pltpu.PrefetchScalarGridSpec(
            num_scalar_prefetch=0,
            grid=(Bp // BB, Tp // TB),
            in_specs=[
                pl.BlockSpec((BB, 1), lambda bi, tb: (bi, 0)),          # seq_lens
                pl.BlockSpec((TB, BB, G), lambda bi, tb: (tb, bi, 0)),  # x W_ih^T + b
                pl.BlockSpec((Hp, G), lambda bi, tb: (0, 0)),           # W_hh^T (resident)
            ],
            out_specs=pl.BlockSpec((TB, BB, Hp), lambda bi, tb: (tb, bi, 0)),
            scratch_shapes=[
                pltpu.VMEM((BB, Hp), f32),   # h carried across the time axis
                pltpu.VMEM((BB, Hp), f32),   # c carried across the time axis
            ],
        ),
        compiler_params=pltpu.CompilerParams(
            # batch blocks are independent (megacore); time is sequential
            dimension_semantics=("parallel", "arbitrary"),
            vmem_limit_bytes=vmem_limit),
    )(lens_p, x_proj, whh_t)

    # Back to batch-first once, then drop batch / time / hidden padding.
    return jnp.transpose(y_pad, (1, 0, 2))[:B, :T, :H]


def _reference_lstm(x, seq_lens, params):
    """Pure-JAX f32 reference (same semantics as the PyTorch module)."""
    B, T, D = x.shape
    w_ih, w_hh, b_ih, b_hh = params
    H = w_hh.shape[1]
    h = jnp.zeros((B, H), jnp.float32)
    c = jnp.zeros((B, H), jnp.float32)
    outs = []
    for t in range(T):
        g = x[:, t, :] @ w_ih.T + h @ w_hh.T + b_ih + b_hh
        i = jax.nn.sigmoid(g[:, 0 * H:1 * H])
        f = jax.nn.sigmoid(g[:, 1 * H:2 * H])
        gg = jnp.tanh(g[:, 2 * H:3 * H])
        o = jax.nn.sigmoid(g[:, 3 * H:4 * H])
        c = f * c + i * gg
        h = o * jnp.tanh(c)
        valid = (t < seq_lens)[:, None]
        outs.append(jnp.where(valid, h, 0.0))
    return jnp.stack(outs, axis=1)


if __name__ == "__main__":
    # Small shapes: batch=2, max_step=8, input_size=16, hidden_size=32.
    B, T, D, H = 2, 8, 16, 32

    key = jax.random.PRNGKey(0)
    k_x, k_wih, k_whh, k_bih, k_bhh = jax.random.split(key, 5)

    x = jax.random.normal(k_x, (B, T, D), dtype=jnp.float32)
    seq_lens = jnp.array([8, 5], dtype=jnp.int32)   # variable lengths, max == T

    # PyTorch nn.LSTM init: uniform(-1/sqrt(H), 1/sqrt(H)), deterministic here.
    bound = 1.0 / jnp.sqrt(jnp.float32(H))
    w_ih = jax.random.uniform(k_wih, (4 * H, D), jnp.float32, -bound, bound)
    w_hh = jax.random.uniform(k_whh, (4 * H, H), jnp.float32, -bound, bound)
    b_ih = jax.random.uniform(k_bih, (4 * H,), jnp.float32, -bound, bound)
    b_hh = jax.random.uniform(k_bhh, (4 * H,), jnp.float32, -bound, bound)
    params = (w_ih, w_hh, b_ih, b_hh)

    y = dynamic_lstm_pallas(x, seq_lens, params)
    y = jax.block_until_ready(y)

    # pad_packed_sequence returns T_out = max(seq_lens); slice outside the kernel.
    t_out = int(jnp.max(seq_lens))
    y = y[:, :t_out, :]

    y_ref = _reference_lstm(x, seq_lens, params)[:, :t_out, :]
    assert y.shape == (B, t_out, H)
    # bf16 weights / x_proj with f32 accumulation: loosened tolerance vs f32 ref.
    assert jnp.allclose(y, y_ref, atol=3e-2, rtol=3e-2), "mismatch vs reference"

    print("KERNEL_OK")
</pallas_src>

<mosaic_0001>
module attributes {stable_mosaic.version = 11 : i64} {
  func.func @_lstm_recurrence_kernel(%arg0: i32, %arg1: i32, %arg2: memref<8x1xi32, #tpu.memory_space<vmem>>, %arg3: memref<8x8x512xbf16, #tpu.memory_space<vmem>>, %arg4: memref<128x512xbf16, #tpu.memory_space<vmem>>, %arg5: memref<8x8x128xf32, #tpu.memory_space<vmem>>, %arg6: memref<8x128xf32, #tpu.memory_space<vmem>>, %arg7: memref<8x128xf32, #tpu.memory_space<vmem>>) attributes {dimension_semantics = [#tpu.dimension_semantics<parallel>, #tpu.dimension_semantics<arbitrary>], iteration_bounds = array<i64: 1, 1>, scalar_prefetch = 0 : i64, scratch_operands = 2 : i64, tpu.core_type = #tpu.core_type<tc>, window_params = [{transform_indices = @transform_0, window_bounds = array<i64: 8, 1>}, {transform_indices = @transform_1, window_bounds = array<i64: 8, 8, 512>}, {pipeline_mode = #tpu.pipeline_mode<synchronous>, transform_indices = @transform_2, window_bounds = array<i64: 128, 512>}, {transform_indices = @transform_3, window_bounds = array<i64: 8, 8, 128>}]} {
    %c0_i32 = arith.constant 0 : i32
    %0 = arith.cmpi eq, %arg1, %c0_i32 : i32
    %1 = arith.extui %0 : i1 to i32
    %c0_i32_0 = arith.constant 0 : i32
    %2 = arith.cmpi ne, %1, %c0_i32_0 : i32
    scf.if %2 {
      %cst_77 = arith.constant 0.000000e+00 : f32
      %266 = vector.broadcast %cst_77 : f32 to vector<8x128xf32>
      %c0_78 = arith.constant 0 : index
      %c0_79 = arith.constant 0 : index
      %267 = vector.load %arg6[%c0_78, %c0_79] : memref<8x128xf32, #tpu.memory_space<vmem>>, vector<8x128xf32>
      tpu.vector_store %arg6[%c0_78, %c0_79], %266 {strides = array<i32>} : memref<8x128xf32, #tpu.memory_space<vmem>>, vector<8x128xf32>,
      %cst_80 = arith.constant 0.000000e+00 : f32
      %268 = vector.broadcast %cst_80 : f32 to vector<8x128xf32>
      %c0_81 = arith.constant 0 : index
      %c0_82 = arith.constant 0 : index
      %269 = vector.load %arg7[%c0_81, %c0_82] : memref<8x128xf32, #tpu.memory_space<vmem>>, vector<8x128xf32>
      tpu.vector_store %arg7[%c0_81, %c0_82], %268 {strides = array<i32>} : memref<8x128xf32, #tpu.memory_space<vmem>>, vector<8x128xf32>,
    } else {
    }
    %c0 = arith.constant 0 : index
    %c0_1 = arith.constant 0 : index
    %3 = vector.load %arg2[%c0, %c0_1] : memref<8x1xi32, #tpu.memory_space<vmem>>, vector<8x1xi32>
    %c8_i32 = arith.constant 8 : i32
    %4 = arith.muli %arg1, %c8_i32 : i32
    %c0_2 = arith.constant 0 : index
    %c0_3 = arith.constant 0 : index
    %5 = vector.load %arg4[%c0_2, %c0_3] : memref<128x512xbf16, #tpu.memory_space<vmem>>, vector<128x512xbf16>
    %c0_4 = arith.constant 0 : index
    %c0_5 = arith.constant 0 : index
    %6 = vector.load %arg6[%c0_4, %c0_5] : memref<8x128xf32, #tpu.memory_space<vmem>>, vector<8x128xf32>
    %c0_6 = arith.constant 0 : index
    %c0_7 = arith.constant 0 : index
    %7 = vector.load %arg7[%c0_6, %c0_7] : memref<8x128xf32, #tpu.memory_space<vmem>>, vector<8x128xf32>
    %c0_8 = arith.constant 0 : index
    %c0_9 = arith.constant 0 : index
    %c0_10 = arith.constant 0 : index
    %8 = vector.load %arg3[%c0_8, %c0_9, %c0_10] : memref<8x8x512xbf16, #tpu.memory_space<vmem>>, vector<1x8x512xbf16>
    %9 = vector.shape_cast %8 : vector<1x8x512xbf16> to vector<8x512xbf16>
    %10 = arith.extf %9 : vector<8x512xbf16> to vector<8x512xf32>
    %11 = arith.truncf %6 : vector<8x128xf32> to vector<8x128xbf16>
    %cst = arith.constant dense<0.000000e+00> : vector<8x512xf32>
    %12 = tpu.matmul %11, %5, %cst {dimension_numbers = #tpu.dot_dimension_numbers<[1], [0], [0], [1], [0, 0, 1, 1], [], []>} : vector<8x128xbf16>, vector<128x512xbf16>, vector<8x512xf32> -> vector<8x512xf32>
    %13 = arith.addf %10, %12 : vector<8x512xf32>
    %14 = vector.extract_strided_slice %13 {offsets = [0, 0], sizes = [8, 384], strides = [1, 1]} : vector<8x512xf32> to vector<8x384xf32>
    %15 = arith.negf %14 : vector<8x384xf32>
    %16 = math.exp %15 : vector<8x384xf32>
    %cst_11 = arith.constant 1.000000e+00 : f32
    %17 = vector.broadcast %cst_11 : f32 to vector<8x384xf32>
    %18 = arith.addf %17, %16 : vector<8x384xf32>
    %19 = arith.divf %17, %18 : vector<8x384xf32>
    %20 = vector.extract_strided_slice %19 {offsets = [0, 0], sizes = [8, 128], strides = [1, 1]} : vector<8x384xf32> to vector<8x128xf32>
    %21 = vector.extract_strided_slice %19 {offsets = [0, 128], sizes = [8, 128], strides = [1, 1]} : vector<8x384xf32> to vector<8x128xf32>
    %22 = vector.extract_strided_slice %19 {offsets = [0, 256], sizes = [8, 128], strides = [1, 1]} : vector<8x384xf32> to vector<8x128xf32>
    %23 = vector.extract_strided_slice %13 {offsets = [0, 384], sizes = [8, 128], strides = [1, 1]} : vector<8x512xf32> to vector<8x128xf32>
    %24 = math.tanh %23 : vector<8x128xf32>
    %25 = arith.mulf %21, %7 : vector<8x128xf32>
    %26 = arith.mulf %20, %24 : vector<8x128xf32>
    %27 = arith.addf %25, %26 : vector<8x128xf32>
    %28 = math.tanh %27 : vector<8x128xf32>
    %29 = arith.mulf %22, %28 : vector<8x128xf32>
    %c0_i32_12 = arith.constant 0 : i32
    %30 = arith.addi %4, %c0_i32_12 : i32
    %31 = vector.broadcast %30 : i32 to vector<8x1xi32>
    %32 = arith.cmpi slt, %31, %3 : vector<8x1xi32>
    %cst_13 = arith.constant 0.000000e+00 : f32
    %33 = vector.shape_cast %32 : vector<8x1xi1> to vector<8x1xi1>
    %34 = vector.broadcast %33 : vector<8x1xi1> to vector<8x128xi1>
    %35 = vector.broadcast %cst_13 : f32 to vector<8x128xf32>
    %36 = arith.select %34, %29, %35 : vector<8x128xi1>, vector<8x128xf32>
    %c0_14 = arith.constant 0 : index
    %c0_15 = arith.constant 0 : index
    %c0_16 = arith.constant 0 : index
    %37 = vector.load %arg5[%c0_14, %c0_15, %c0_16] : memref<8x8x128xf32, #tpu.memory_space<vmem>>, vector<1x8x128xf32>
    %38 = vector.shape_cast %37 : vector<1x8x128xf32> to vector<8x128xf32>
    %39 = vector.shape_cast %36 : vector<8x128xf32> to vector<1x8x128xf32>
    tpu.vector_store %arg5[%c0_14, %c0_15, %c0_16], %39 {strides = array<i32>} : memref<8x8x128xf32, #tpu.memory_space<vmem>>, vector<1x8x128xf32>,
    %c1 = arith.constant 1 : index
    %c0_17 = arith.constant 0 : index
    %c0_18 = arith.constant 0 : index
    %40 = vector.load %arg3[%c1, %c0_17, %c0_18] : memref<8x8x512xbf16, #tpu.memory_space<vmem>>, vector<1x8x512xbf16>
    %41 = vector.shape_cast %40 : vector<1x8x512xbf16> to vector<8x512xbf16>
    %42 = arith.extf %41 : vector<8x512xbf16> to vector<8x512xf32>
    %43 = arith.truncf %29 : vector<8x128xf32> to vector<8x128xbf16>
    %cst_19 = arith.constant dense<0.000000e+00> : vector<8x512xf32>
    %44 = tpu.matmul %43, %5, %cst_19 {dimension_numbers = #tpu.dot_dimension_numbers<[1], [0], [0], [1], [0, 0, 1, 1], [], []>} : vector<8x128xbf16>, vector<128x512xbf16>, vector<8x512xf32> -> vector<8x512xf32>
    %45 = arith.addf %42, %44 : vector<8x512xf32>
    %46 = vector.extract_strided_slice %45 {offsets = [0, 0], sizes = [8, 384], strides = [1, 1]} : vector<8x512xf32> to vector<8x384xf32>
    %47 = arith.negf %46 : vector<8x384xf32>
    %48 = math.exp %47 : vector<8x384xf32>
    %cst_20 = arith.constant 1.000000e+00 : f32
    %49 = vector.broadcast %cst_20 : f32 to vector<8x384xf32>
    %50 = arith.addf %49, %48 : vector<8x384xf32>
    %51 = arith.divf %49, %50 : vector<8x384xf32>
    %52 = vector.extract_strided_slice %51 {offsets = [0, 0], sizes = [8, 128], strides = [1, 1]} : vector<8x384xf32> to vector<8x128xf32>
    %53 = vector.extract_strided_slice %51 {offsets = [0, 128], sizes = [8, 128], strides = [1, 1]} : vector<8x384xf32> to vector<8x128xf32>
    %54 = vector.extract_strided_slice %51 {offsets = [0, 256], sizes = [8, 128], strides = [1, 1]} : vector<8x384xf32> to vector<8x128xf32>
    %55 = vector.extract_strided_slice %45 {offsets = [0, 384], sizes = [8, 128], strides = [1, 1]} : vector<8x512xf32> to vector<8x128xf32>
    %56 = math.tanh %55 : vector<8x128xf32>
    %57 = arith.mulf %53, %27 : vector<8x128xf32>
    %58 = arith.mulf %52, %56 : vector<8x128xf32>
    %59 = arith.addf %57, %58 : vector<8x128xf32>
    %60 = math.tanh %59 : vector<8x128xf32>
    %61 = arith.mulf %54, %60 : vector<8x128xf32>
    %c1_i32 = arith.constant 1 : i32
    %62 = arith.addi %4, %c1_i32 : i32
    %63 = vector.broadcast %62 : i32 to vector<8x1xi32>
    %64 = arith.cmpi slt, %63, %3 : vector<8x1xi32>
    %cst_21 = arith.constant 0.000000e+00 : f32
    %65 = vector.shape_cast %64 : vector<8x1xi1> to vector<8x1xi1>
    %66 = vector.broadcast %65 : vector<8x1xi1> to vector<8x128xi1>
    %67 = vector.broadcast %cst_21 : f32 to vector<8x128xf32>
    %68 = arith.select %66, %61, %67 : vector<8x128xi1>, vector<8x128xf32>
    %c1_22 = arith.constant 1 : index
    %c0_23 = arith.constant 0 : index
    %c0_24 = arith.constant 0 : index
    %69 = vector.load %arg5[%c1_22, %c0_23, %c0_24] : memref<8x8x128xf32, #tpu.memory_space<vmem>>, vector<1x8x128xf32>
    %70 = vector.shape_cast %69 : vector<1x8x128xf32> to vector<8x128xf32>
    %71 = vector.shape_cast %68 : vector<8x128xf32> to vector<1x8x128xf32>
    tpu.vector_store %arg5[%c1_22, %c0_23, %c0_24], %71 {strides = array<i32>} : memref<8x8x128xf32, #tpu.memory_space<vmem>>, vector<1x8x128xf32>,
    %c2 = arith.constant 2 : index
    %c0_25 = arith.constant 0 : index
    %c0_26 = arith.constant 0 : index
    %72 = vector.load %arg3[%c2, %c0_25, %c0_26] : memref<8x8x512xbf16, #tpu.memory_space<vmem>>, vector<1x8x512xbf16>
    %73 = vector.shape_cast %72 : vector<1x8x512xbf16> to vector<8x512xbf16>
    %74 = arith.extf %73 : vector<8x512xbf16> to vector<8x512xf32>
    %75 = arith.truncf %61 : vector<8x128xf32> to vector<8x128xbf16>
    %cst_27 = arith.constant dense<0.000000e+00> : vector<8x512xf32>
    %76 = tpu.matmul %75, %5, %cst_27 {dimension_numbers = #tpu.dot_dimension_numbers<[1], [0], [0], [1], [0, 0, 1, 1], [], []>} : vector<8x128xbf16>, vector<128x512xbf16>, vector<8x512xf32> -> vector<8x512xf32>
    %77 = arith.addf %74, %76 : vector<8x512xf32>
    %78 = vector.extract_strided_slice %77 {offsets = [0, 0], sizes = [8, 384], strides = [1, 1]} : vector<8x512xf32> to vector<8x384xf32>
    %79 = arith.negf %78 : vector<8x384xf32>
    %80 = math.exp %79 : vector<8x384xf32>
    %cst_28 = arith.constant 1.000000e+00 : f32
    %81 = vector.broadcast %cst_28 : f32 to vector<8x384xf32>
    %82 = arith.addf %81, %80 : vector<8x384xf32>
    %83 = arith.divf %81, %82 : vector<8x384xf32>
    %84 = vector.extract_strided_slice %83 {offsets = [0, 0], sizes = [8, 128], strides = [1, 1]} : vector<8x384xf32> to vector<8x128xf32>
    %85 = vector.extract_strided_slice %83 {offsets = [0, 128], sizes = [8, 128], strides = [1, 1]} : vector<8x384xf32> to vector<8x128xf32>
    %86 = vector.extract_strided_slice %83 {offsets = [0, 256], sizes = [8, 128], strides = [1, 1]} : vector<8x384xf32> to vector<8x128xf32>
    %87 = vector.extract_strided_slice %77 {offsets = [0, 384], sizes = [8, 128], strides = [1, 1]} : vector<8x512xf32> to vector<8x128xf32>
    %88 = math.tanh %87 : vector<8x128xf32>
    %89 = arith.mulf %85, %59 : vector<8x128xf32>
    %90 = arith.mulf %84, %88 : vector<8x128xf32>
    %91 = arith.addf %89, %90 : vector<8x128xf32>
    %92 = math.tanh %91 : vector<8x128xf32>
    %93 = arith.mulf %86, %92 : vector<8x128xf32>
    %c2_i32 = arith.constant 2 : i32
    %94 = arith.addi %4, %c2_i32 : i32
    %95 = vector.broadcast %94 : i32 to vector<8x1xi32>
    %96 = arith.cmpi slt, %95, %3 : vector<8x1xi32>
    %cst_29 = arith.constant 0.000000e+00 : f32
    %97 = vector.shape_cast %96 : vector<8x1xi1> to vector<8x1xi1>
    %98 = vector.broadcast %97 : vector<8x1xi1> to vector<8x128xi1>
    %99 = vector.broadcast %cst_29 : f32 to vector<8x128xf32>
    %100 = arith.select %98, %93, %99 : vector<8x128xi1>, vector<8x128xf32>
    %c2_30 = arith.constant 2 : index
    %c0_31 = arith.constant 0 : index
    %c0_32 = arith.constant 0 : index
    %101 = vector.load %arg5[%c2_30, %c0_31, %c0_32] : memref<8x8x128xf32, #tpu.memory_space<vmem>>, vector<1x8x128xf32>
    %102 = vector.shape_cast %101 : vector<1x8x128xf32> to vector<8x128xf32>
    %103 = vector.shape_cast %100 : vector<8x128xf32> to vector<1x8x128xf32>
    tpu.vector_store %arg5[%c2_30, %c0_31, %c0_32], %103 {strides = array<i32>} : memref<8x8x128xf32, #tpu.memory_space<vmem>>, vector<1x8x128xf32>,
    %c3 = arith.constant 3 : index
    %c0_33 = arith.constant 0 : index
    %c0_34 = arith.constant 0 : index
    %104 = vector.load %arg3[%c3, %c0_33, %c0_34] : memref<8x8x512xbf16, #tpu.memory_space<vmem>>, vector<1x8x512xbf16>
    %105 = vector.shape_cast %104 : vector<1x8x512xbf16> to vector<8x512xbf16>
    %106 = arith.extf %105 : vector<8x512xbf16> to vector<8x512xf32>
    %107 = arith.truncf %93 : vector<8x128xf32> to vector<8x128xbf16>
    %cst_35 = arith.constant dense<0.000000e+00> : vector<8x512xf32>
    %108 = tpu.matmul %107, %5, %cst_35 {dimension_numbers = #tpu.dot_dimension_numbers<[1], [0], [0], [1], [0, 0, 1, 1], [], []>} : vector<8x128xbf16>, vector<128x512xbf16>, vector<8x512xf32> -> vector<8x512xf32>
    %109 = arith.addf %106, %108 : vector<8x512xf32>
    %110 = vector.extract_strided_slice %109 {offsets = [0, 0], sizes = [8, 384], strides = [1, 1]} : vector<8x512xf32> to vector<8x384xf32>
    %111 = arith.negf %110 : vector<8x384xf32>
    %112 = math.exp %111 : vector<8x384xf32>
    %cst_36 = arith.constant 1.000000e+00 : f32
    %113 = vector.broadcast %cst_36 : f32 to vector<8x384xf32>
    %114 = arith.addf %113, %112 : vector<8x384xf32>
    %115 = arith.divf %113, %114 : vector<8x384xf32>
    %116 = vector.extract_strided_slice %115 {offsets = [0, 0], sizes = [8, 128], strides = [1, 1]} : vector<8x384xf32> to vector<8x128xf32>
    %117 = vector.extract_strided_slice %115 {offsets = [0, 128], sizes = [8, 128], strides = [1, 1]} : vector<8x384xf32> to vector<8x128xf32>
    %118 = vector.extract_strided_slice %115 {offsets = [0, 256], sizes = [8, 128], strides = [1, 1]} : vector<8x384xf32> to vector<8x128xf32>
    %119 = vector.extract_strided_slice %109 {offsets = [0, 384], sizes = [8, 128], strides = [1, 1]} : vector<8x512xf32> to vector<8x128xf32>
    %120 = math.tanh %119 : vector<8x128xf32>
    %121 = arith.mulf %117, %91 : vector<8x128xf32>
    %122 = arith.mulf %116, %120 : vector<8x128xf32>
    %123 = arith.addf %121, %122 : vector<8x128xf32>
    %124 = math.tanh %123 : vector<8x128xf32>
    %125 = arith.mulf %118, %124 : vector<8x128xf32>
    %c3_i32 = arith.constant 3 : i32
    %126 = arith.addi %4, %c3_i32 : i32
    %127 = vector.broadcast %126 : i32 to vector<8x1xi32>
    %128 = arith.cmpi slt, %127, %3 : vector<8x1xi32>
    %cst_37 = arith.constant 0.000000e+00 : f32
    %129 = vector.shape_cast %128 : vector<8x1xi1> to vector<8x1xi1>
    %130 = vector.broadcast %129 : vector<8x1xi1> to vector<8x128xi1>
    %131 = vector.broadcast %cst_37 : f32 to vector<8x128xf32>
    %132 = arith.select %130, %125, %131 : vector<8x128xi1>, vector<8x128xf32>
    %c3_38 = arith.constant 3 : index
    %c0_39 = arith.constant 0 : index
    %c0_40 = arith.constant 0 : index
    %133 = vector.load %arg5[%c3_38, %c0_39, %c0_40] : memref<8x8x128xf32, #tpu.memory_space<vmem>>, vector<1x8x128xf32>
    %134 = vector.shape_cast %133 : vector<1x8x128xf32> to vector<8x128xf32>
    %135 = vector.shape_cast %132 : vector<8x128xf32> to vector<1x8x128xf32>
    tpu.vector_store %arg5[%c3_38, %c0_39, %c0_40], %135 {strides = array<i32>} : memref<8x8x128xf32, #tpu.memory_space<vmem>>, vector<1x8x128xf32>,
    %c4 = arith.constant 4 : index
    %c0_41 = arith.constant 0 : index
    %c0_42 = arith.constant 0 : index
    %136 = vector.load %arg3[%c4, %c0_41, %c0_42] : memref<8x8x512xbf16, #tpu.memory_space<vmem>>, vector<1x8x512xbf16>
    %137 = vector.shape_cast %136 : vector<1x8x512xbf16> to vector<8x512xbf16>
    %138 = arith.extf %137 : vector<8x512xbf16> to vector<8x512xf32>
    %139 = arith.truncf %125 : vector<8x128xf32> to vector<8x128xbf16>
    %cst_43 = arith.constant dense<0.000000e+00> : vector<8x512xf32>
    %140 = tpu.matmul %139, %5, %cst_43 {dimension_numbers = #tpu.dot_dimension_numbers<[1], [0], [0], [1], [0, 0, 1, 1], [], []>} : vector<8x128xbf16>, vector<128x512xbf16>, vector<8x512xf32> -> vector<8x512xf32>
    %141 = arith.addf %138, %140 : vector<8x512xf32>
    %142 = vector.extract_strided_slice %141 {offsets = [0, 0], sizes = [8, 384], strides = [1, 1]} : vector<8x512xf32> to vector<8x384xf32>
    %143 = arith.negf %142 : vector<8x384xf32>
    %144 = math.exp %143 : vector<8x384xf32>
    %cst_44 = arith.constant 1.000000e+00 : f32
    %145 = vector.broadcast %cst_44 : f32 to vector<8x384xf32>
    %146 = arith.addf %145, %144 : vector<8x384xf32>
    %147 = arith.divf %145, %146 : vector<8x384xf32>
    %148 = vector.extract_strided_slice %147 {offsets = [0, 0], sizes = [8, 128], strides = [1, 1]} : vector<8x384xf32> to vector<8x128xf32>
    %149 = vector.extract_strided_slice %147 {offsets = [0, 128], sizes = [8, 128], strides = [1, 1]} : vector<8x384xf32> to vector<8x128xf32>
    %150 = vector.extract_strided_slice %147 {offsets = [0, 256], sizes = [8, 128], strides = [1, 1]} : vector<8x384xf32> to vector<8x128xf32>
    %151 = vector.extract_strided_slice %141 {offsets = [0, 384], sizes = [8, 128], strides = [1, 1]} : vector<8x512xf32> to vector<8x128xf32>
    %152 = math.tanh %151 : vector<8x128xf32>
    %153 = arith.mulf %149, %123 : vector<8x128xf32>
    %154 = arith.mulf %148, %152 : vector<8x128xf32>
    %155 = arith.addf %153, %154 : vector<8x128xf32>
    %156 = math.tanh %155 : vector<8x128xf32>
    %157 = arith.mulf %150, %156 : vector<8x128xf32>
    %c4_i32 = arith.constant 4 : i32
    %158 = arith.addi %4, %c4_i32 : i32
    %159 = vector.broadcast %158 : i32 to vector<8x1xi32>
    %160 = arith.cmpi slt, %159, %3 : vector<8x1xi32>
    %cst_45 = arith.constant 0.000000e+00 : f32
    %161 = vector.shape_cast %160 : vector<8x1xi1> to vector<8x1xi1>
    %162 = vector.broadcast %161 : vector<8x1xi1> to vector<8x128xi1>
    %163 = vector.broadcast %cst_45 : f32 to vector<8x128xf32>
    %164 = arith.select %162, %157, %163 : vector<8x128xi1>, vector<8x128xf32>
    %c4_46 = arith.constant 4 : index
    %c0_47 = arith.constant 0 : index
    %c0_48 = arith.constant 0 : index
    %165 = vector.load %arg5[%c4_46, %c0_47, %c0_48] : memref<8x8x128xf32, #tpu.memory_space<vmem>>, vector<1x8x128xf32>
    %166 = vector.shape_cast %165 : vector<1x8x128xf32> to vector<8x128xf32>
    %167 = vector.shape_cast %164 : vector<8x128xf32> to vector<1x8x128xf32>
    tpu.vector_store %arg5[%c4_46, %c0_47, %c0_48], %167 {strides = array<i32>} : memref<8x8x128xf32, #tpu.memory_space<vmem>>, vector<1x8x128xf32>,
    %c5 = arith.constant 5 : index
    %c0_49 = arith.constant 0 : index
    %c0_50 = arith.constant 0 : index
    %168 = vector.load %arg3[%c5, %c0_49, %c0_50] : memref<8x8x512xbf16, #tpu.memory_space<vmem>>, vector<1x8x512xbf16>
    %169 = vector.shape_cast %168 : vector<1x8x512xbf16> to vector<8x512xbf16>
    %170 = arith.extf %169 : vector<8x512xbf16> to vector<8x512xf32>
    %171 = arith.truncf %157 : vector<8x128xf32> to vector<8x128xbf16>
    %cst_51 = arith.constant dense<0.000000e+00> : vector<8x512xf32>
    %172 = tpu.matmul %171, %5, %cst_51 {dimension_numbers = #tpu.dot_dimension_numbers<[1], [0], [0], [1], [0, 0, 1, 1], [], []>} : vector<8x128xbf16>, vector<128x512xbf16>, vector<8x512xf32> -> vector<8x512xf32>
    %173 = arith.addf %170, %172 : vector<8x512xf32>
    %174 = vector.extract_strided_slice %173 {offsets = [0, 0], sizes = [8, 384], strides = [1, 1]} : vector<8x512xf32> to vector<8x384xf32>
    %175 = arith.negf %174 : vector<8x384xf32>
    %176 = math.exp %175 : vector<8x384xf32>
    %cst_52 = arith.constant 1.000000e+00 : f32
    %177 = vector.broadcast %cst_52 : f32 to vector<8x384xf32>
    %178 = arith.addf %177, %176 : vector<8x384xf32>
    %179 = arith.divf %177, %178 : vector<8x384xf32>
    %180 = vector.extract_strided_slice %179 {offsets = [0, 0], sizes = [8, 128], strides = [1, 1]} : vector<8x384xf32> to vector<8x128xf32>
    %181 = vector.extract_strided_slice %179 {offsets = [0, 128], sizes = [8, 128], strides = [1, 1]} : vector<8x384xf32> to vector<8x128xf32>
    %182 = vector.extract_strided_slice %179 {offsets = [0, 256], sizes = [8, 128], strides = [1, 1]} : vector<8x384xf32> to vector<8x128xf32>
    %183 = vector.extract_strided_slice %173 {offsets = [0, 384], sizes = [8, 128], strides = [1, 1]} : vector<8x512xf32> to vector<8x128xf32>
    %184 = math.tanh %183 : vector<8x128xf32>
    %185 = arith.mulf %181, %155 : vector<8x128xf32>
    %186 = arith.mulf %180, %184 : vector<8x128xf32>
    %187 = arith.addf %185, %186 : vector<8x128xf32>
    %188 = math.tanh %187 : vector<8x128xf32>
    %189 = arith.mulf %182, %188 : vector<8x128xf32>
    %c5_i32 = arith.constant 5 : i32
    %190 = arith.addi %4, %c5_i32 : i32
    %191 = vector.broadcast %190 : i32 to vector<8x1xi32>
    %192 = arith.cmpi slt, %191, %3 : vector<8x1xi32>
    %cst_53 = arith.constant 0.000000e+00 : f32
    %193 = vector.shape_cast %192 : vector<8x1xi1> to vector<8x1xi1>
    %194 = vector.broadcast %193 : vector<8x1xi1> to vector<8x128xi1>
    %195 = vector.broadcast %cst_53 : f32 to vector<8x128xf32>
    %196 = arith.select %194, %189, %195 : vector<8x128xi1>, vector<8x128xf32>
    %c5_54 = arith.constant 5 : index
    %c0_55 = arith.constant 0 : index
    %c0_56 = arith.constant 0 : index
    %197 = vector.load %arg5[%c5_54, %c0_55, %c0_56] : memref<8x8x128xf32, #tpu.memory_space<vmem>>, vector<1x8x128xf32>
    %198 = vector.shape_cast %197 : vector<1x8x128xf32> to vector<8x128xf32>
    %199 = vector.shape_cast %196 : vector<8x128xf32> to vector<1x8x128xf32>
    tpu.vector_store %arg5[%c5_54, %c0_55, %c0_56], %199 {strides = array<i32>} : memref<8x8x128xf32, #tpu.memory_space<vmem>>, vector<1x8x128xf32>,
    %c6 = arith.constant 6 : index
    %c0_57 = arith.constant 0 : index
    %c0_58 = arith.constant 0 : index
    %200 = vector.load %arg3[%c6, %c0_57, %c0_58] : memref<8x8x512xbf16, #tpu.memory_space<vmem>>, vector<1x8x512xbf16>
    %201 = vector.shape_cast %200 : vector<1x8x512xbf16> to vector<8x512xbf16>
    %202 = arith.extf %201 : vector<8x512xbf16> to vector<8x512xf32>
    %203 = arith.truncf %189 : vector<8x128xf32> to vector<8x128xbf16>
    %cst_59 = arith.constant dense<0.000000e+00> : vector<8x512xf32>
    %204 = tpu.matmul %203, %5, %cst_59 {dimension_numbers = #tpu.dot_dimension_numbers<[1], [0], [0], [1], [0, 0, 1, 1], [], []>} : vector<8x128xbf16>, vector<128x512xbf16>, vector<8x512xf32> -> vector<8x512xf32>
    %205 = arith.addf %202, %204 : vector<8x512xf32>
    %206 = vector.extract_strided_slice %205 {offsets = [0, 0], sizes = [8, 384], strides = [1, 1]} : vector<8x512xf32> to vector<8x384xf32>
    %207 = arith.negf %206 : vector<8x384xf32>
    %208 = math.exp %207 : vector<8x384xf32>
    %cst_60 = arith.constant 1.000000e+00 : f32
    %209 = vector.broadcast %cst_60 : f32 to vector<8x384xf32>
    %210 = arith.addf %209, %208 : vector<8x384xf32>
    %211 = arith.divf %209, %210 : vector<8x384xf32>
    %212 = vector.extract_strided_slice %211 {offsets = [0, 0], sizes = [8, 128], strides = [1, 1]} : vector<8x384xf32> to vector<8x128xf32>
    %213 = vector.extract_strided_slice %211 {offsets = [0, 128], sizes = [8, 128], strides = [1, 1]} : vector<8x384xf32> to vector<8x128xf32>
    %214 = vector.extract_strided_slice %211 {offsets = [0, 256], sizes = [8, 128], strides = [1, 1]} : vector<8x384xf32> to vector<8x128xf32>
    %215 = vector.extract_strided_slice %205 {offsets = [0, 384], sizes = [8, 128], strides = [1, 1]} : vector<8x512xf32> to vector<8x128xf32>
    %216 = math.tanh %215 : vector<8x128xf32>
    %217 = arith.mulf %213, %187 : vector<8x128xf32>
    %218 = arith.mulf %212, %216 : vector<8x128xf32>
    %219 = arith.addf %217, %218 : vector<8x128xf32>
    %220 = math.tanh %219 : vector<8x128xf32>
    %221 = arith.mulf %214, %220 : vector<8x128xf32>
    %c6_i32 = arith.constant 6 : i32
    %222 = arith.addi %4, %c6_i32 : i32
    %223 = vector.broadcast %222 : i32 to vector<8x1xi32>
    %224 = arith.cmpi slt, %223, %3 : vector<8x1xi32>
    %cst_61 = arith.constant 0.000000e+00 : f32
    %225 = vector.shape_cast %224 : vector<8x1xi1> to vector<8x1xi1>
    %226 = vector.broadcast %225 : vector<8x1xi1> to vector<8x128xi1>
    %227 = vector.broadcast %cst_61 : f32 to vector<8x128xf32>
    %228 = arith.select %226, %221, %227 : vector<8x128xi1>, vector<8x128xf32>
    %c6_62 = arith.constant 6 : index
    %c0_63 = arith.constant 0 : index
    %c0_64 = arith.constant 0 : index
    %229 = vector.load %arg5[%c6_62, %c0_63, %c0_64] : memref<8x8x128xf32, #tpu.memory_space<vmem>>, vector<1x8x128xf32>
    %230 = vector.shape_cast %229 : vector<1x8x128xf32> to vector<8x128xf32>
    %231 = vector.shape_cast %228 : vector<8x128xf32> to vector<1x8x128xf32>
    tpu.vector_store %arg5[%c6_62, %c0_63, %c0_64], %231 {strides = array<i32>} : memref<8x8x128xf32, #tpu.memory_space<vmem>>, vector<1x8x128xf32>,
    %c7 = arith.constant 7 : index
    %c0_65 = arith.constant 0 : index
    %c0_66 = arith.constant 0 : index
    %232 = vector.load %arg3[%c7, %c0_65, %c0_66] : memref<8x8x512xbf16, #tpu.memory_space<vmem>>, vector<1x8x512xbf16>
    %233 = vector.shape_cast %232 : vector<1x8x512xbf16> to vector<8x512xbf16>
    %234 = arith.extf %233 : vector<8x512xbf16> to vector<8x512xf32>
    %235 = arith.truncf %221 : vector<8x128xf32> to vector<8x128xbf16>
    %cst_67 = arith.constant dense<0.000000e+00> : vector<8x512xf32>
    %236 = tpu.matmul %235, %5, %cst_67 {dimension_numbers = #tpu.dot_dimension_numbers<[1], [0], [0], [1], [0, 0, 1, 1], [], []>} : vector<8x128xbf16>, vector<128x512xbf16>, vector<8x512xf32> -> vector<8x512xf32>
    %237 = arith.addf %234, %236 : vector<8x512xf32>
    %238 = vector.extract_strided_slice %237 {offsets = [0, 0], sizes = [8, 384], strides = [1, 1]} : vector<8x512xf32> to vector<8x384xf32>
    %239 = arith.negf %238 : vector<8x384xf32>
    %240 = math.exp %239 : vector<8x384xf32>
    %cst_68 = arith.constant 1.000000e+00 : f32
    %241 = vector.broadcast %cst_68 : f32 to vector<8x384xf32>
    %242 = arith.addf %241, %240 : vector<8x384xf32>
    %243 = arith.divf %241, %242 : vector<8x384xf32>
    %244 = vector.extract_strided_slice %243 {offsets = [0, 0], sizes = [8, 128], strides = [1, 1]} : vector<8x384xf32> to vector<8x128xf32>
    %245 = vector.extract_strided_slice %243 {offsets = [0, 128], sizes = [8, 128], strides = [1, 1]} : vector<8x384xf32> to vector<8x128xf32>
    %246 = vector.extract_strided_slice %243 {offsets = [0, 256], sizes = [8, 128], strides = [1, 1]} : vector<8x384xf32> to vector<8x128xf32>
    %247 = vector.extract_strided_slice %237 {offsets = [0, 384], sizes = [8, 128], strides = [1, 1]} : vector<8x512xf32> to vector<8x128xf32>
    %248 = math.tanh %247 : vector<8x128xf32>
    %249 = arith.mulf %245, %219 : vector<8x128xf32>
    %250 = arith.mulf %244, %248 : vector<8x128xf32>
    %251 = arith.addf %249, %250 : vector<8x128xf32>
    %252 = math.tanh %251 : vector<8x128xf32>
    %253 = arith.mulf %246, %252 : vector<8x128xf32>
    %c7_i32 = arith.constant 7 : i32
    %254 = arith.addi %4, %c7_i32 : i32
    %255 = vector.broadcast %254 : i32 to vector<8x1xi32>
    %256 = arith.cmpi slt, %255, %3 : vector<8x1xi32>
    %cst_69 = arith.constant 0.000000e+00 : f32
    %257 = vector.shape_cast %256 : vector<8x1xi1> to vector<8x1xi1>
    %258 = vector.broadcast %257 : vector<8x1xi1> to vector<8x128xi1>
    %259 = vector.broadcast %cst_69 : f32 to vector<8x128xf32>
    %260 = arith.select %258, %253, %259 : vector<8x128xi1>, vector<8x128xf32>
    %c7_70 = arith.constant 7 : index
    %c0_71 = arith.constant 0 : index
    %c0_72 = arith.constant 0 : index
    %261 = vector.load %arg5[%c7_70, %c0_71, %c0_72] : memref<8x8x128xf32, #tpu.memory_space<vmem>>, vector<1x8x128xf32>
    %262 = vector.shape_cast %261 : vector<1x8x128xf32> to vector<8x128xf32>
    %263 = vector.shape_cast %260 : vector<8x128xf32> to vector<1x8x128xf32>
    tpu.vector_store %arg5[%c7_70, %c0_71, %c0_72], %263 {strides = array<i32>} : memref<8x8x128xf32, #tpu.memory_space<vmem>>, vector<1x8x128xf32>,
    %c0_73 = arith.constant 0 : index
    %c0_74 = arith.constant 0 : index
    %264 = vector.load %arg6[%c0_73, %c0_74] : memref<8x128xf32, #tpu.memory_space<vmem>>, vector<8x128xf32>
    tpu.vector_store %arg6[%c0_73, %c0_74], %253 {strides = array<i32>} : memref<8x128xf32, #tpu.memory_space<vmem>>, vector<8x128xf32>,
    %c0_75 = arith.constant 0 : index
    %c0_76 = arith.constant 0 : index
    %265 = vector.load %arg7[%c0_75, %c0_76] : memref<8x128xf32, #tpu.memory_space<vmem>>, vector<8x128xf32>
    tpu.vector_store %arg7[%c0_75, %c0_76], %251 {strides = array<i32>} : memref<8x128xf32, #tpu.memory_space<vmem>>, vector<8x128xf32>,
    return
  }
  func.func @transform_0(%arg0: i32, %arg1: i32) -> (i32, i32) {
    %c0_i32 = arith.constant 0 : i32
    %c0_i32_0 = arith.constant 0 : i32
    return %arg0, %c0_i32 : i32, i32
  }
  func.func @transform_1(%arg0: i32, %arg1: i32) -> (i32, i32, i32) {
    %c0_i32 = arith.constant 0 : i32
    %c0_i32_0 = arith.constant 0 : i32
    return %arg1, %arg0, %c0_i32 : i32, i32, i32
  }
  func.func @transform_2(%arg0: i32, %arg1: i32) -> (i32, i32) {
    %c0_i32 = arith.constant 0 : i32
    %c0_i32_0 = arith.constant 0 : i32
    %c0_i32_1 = arith.constant 0 : i32
    return %c0_i32, %c0_i32_0 : i32, i32
  }
  func.func @transform_3(%arg0: i32, %arg1: i32) -> (i32, i32, i32) {
    %c0_i32 = arith.constant 0 : i32
    %c0_i32_0 = arith.constant 0 : i32
    return %arg1, %arg0, %c0_i32 : i32, i32, i32
  }
}

</mosaic_0001>

<llo_original>
// kernel: tpu_custom_call.1
$region0: #{tpu_custom_call.1}
  #allocation0 [shape = 'u32[]', space=smem, size = 0x4, offset = 0x4, fixed_abs, tag = 'smem constant byte address 0x4 - core index']
  #allocation1 [shape = 'u32[144,128]{1,0:T(1,128)}', space=vmem, size = 0x12000, scoped, tag = 'internal scratch']
  #allocation2 [shape = 'f32[8,128]{1,0:T(8,128)}', space=vmem, size = 0x1000, scoped, tag = 'scratch operand']
  #allocation3 [shape = 'f32[8,128]{1,0:T(8,128)}', space=vmem, size = 0x1000, scoped, tag = 'scratch operand']
  %s0 = inlined_call_operand.vmem [shape: s32[8,1], index: 0, kind: input, shape index: {}]
  %s1 = inlined_call_operand.hbm [shape: bf16[8,8,512], index: 1, kind: input, shape index: {}]
  %s2 = inlined_call_operand.hbm [shape: bf16[128,512], index: 2, kind: input, shape index: {}]
  %s3 = inlined_call_operand.hbm [shape: f32[8,8,128], index: 3, kind: output, shape index: {}]
  %s4 = sld [smem:[#allocation0]]
  $region34: #{tpu_custom_call.1} parent=0
    _
  %s6 = ssub.s32 1, %s4
  %s7 = scalar_select 0, %s6, %s4
  $region1: #{tpu_custom_call.1} parent=0
    #allocation4 [shape = 'u8[65536]{0}', space=vmem, size = 0x10000, scoped, tag = 'input window, operand 1, single buffered']
    #allocation5 [shape = 's32[1]{0}', space=sflag, size = 0x4, scoped, tag = 'scoped memory for tpu_custom_call.1']
    #allocation6 [shape = 's32[1]{0}', space=sflag, size = 0x4, scoped, tag = 'scoped memory for tpu_custom_call.1']
    #allocation7 [shape = 'u8[131072]{0}', space=vmem, size = 0x20000, scoped, tag = 'input window, operand 2, single buffered']
    #allocation8 [shape = 's32[1]{0}', space=sflag, size = 0x4, scoped, tag = 'scoped memory for tpu_custom_call.1']
    #allocation9 [shape = 'u8[32768]{0}', space=vmem, size = 0x8000, scoped, tag = 'output window, operand 0, single buffered']
    %8 = vsyncpa [#allocation5], 0
    %9 = vsyncpa [#allocation8], 0
    %10 = vsyncpa [#allocation6], 0
    // Predicated region
    $region2: #{tpu_custom_call.1} parent=1 // pred_check
      _
    $region3: #{tpu_custom_call.1} parent=1 // pred_check_branch
      %12 = sbr.rel (0) target = $region5
    $region4: #{tpu_custom_call.1} parent=1 // pred_region
      _
    $region5: #{tpu_custom_call.1} parent=1 // pred_fallthru
      _
    // Predicated region
    $region6: #{tpu_custom_call.1} parent=1 // pred_check
      _
    $region7: #{tpu_custom_call.1} parent=1 // pred_check_branch
      %14 = sbr.rel (0) target = $region9
    $region8: #{tpu_custom_call.1} parent=1 // pred_region
      %s16 = ssub.s32 2048, 2048
      %17 = vsyncadd [#allocation5], %s16
      %s18 = sshll.u32 [#allocation4], 4
      %s19 = int_to_ptr.vmem [resolvable:$true] %s18
      %24 = dma.hbm_to_vmem [thread:$0]  %s1, 2048, %s19, [#allocation5], 256, 256, 16
    $region9: #{tpu_custom_call.1} parent=1 // pred_fallthru
      _
    // Predicated region
    $region10: #{tpu_custom_call.1} parent=1 // pred_check
      _
    $region11: #{tpu_custom_call.1} parent=1 // pred_check_branch
      %26 = sbr.rel (0) target = $region13
    $region12: #{tpu_custom_call.1} parent=1 // pred_region
      %s28 = ssub.s32 4096, 4096
      %29 = vsyncadd [#allocation8], %s28
      %s30 = sshll.u32 [#allocation7], 4
      %s31 = int_to_ptr.vmem [resolvable:$true] %s30
      %36 = dma.hbm_to_vmem [thread:$0]  %s2, 4096, %s31, [#allocation8], 256, 256, 16
    $region13: #{tpu_custom_call.1} parent=1 // pred_fallthru
      _
    // Predicated region
    $region14: #{tpu_custom_call.1} parent=1 // pred_check
      _
    $region15: #{tpu_custom_call.1} parent=1 // pred_check_branch
      %38 = sbr.rel (0) target = $region17
    $region16: #{tpu_custom_call.1} parent=1 // pred_region
      %39 = dma.done [#allocation5], 2048
    $region17: #{tpu_custom_call.1} parent=1 // pred_fallthru
      _
    // Predicated region
    $region18: #{tpu_custom_call.1} parent=1 // pred_check
      _
    $region19: #{tpu_custom_call.1} parent=1 // pred_check_branch
      %41 = sbr.rel (0) target = $region21
    $region20: #{tpu_custom_call.1} parent=1 // pred_region
      %42 = dma.done [#allocation8], 4096
    $region21: #{tpu_custom_call.1} parent=1 // pred_fallthru
      _
    %p44 = scmp.eq.s32.totalorder 0, 0
    // Predicated region
    $region22: #{tpu_custom_call.1} parent=1 // pred_check
      %p45 = pneg %p44
    $region23: #{tpu_custom_call.1} parent=1 // pred_check_branch
      %47 = sbr.rel (%p45) target = $region25
    $region24: #{tpu_custom_call.1} parent=1 // pred_region
      %48 = vst [vmem:[#allocation2] sm:$0xff] 0.0
      %49 = vst [vmem:[#allocation3] sm:$0xff] 0.0
    $region25: #{tpu_custom_call.1} parent=1 // pred_fallthru
      _
    %v50 = vld [vmem:[%s0] sm:$0xff]
    %s51 = smul.u32 0, 8
    %v52 = vld [vmem:[#allocation7] sm:$0xff]
    %v53 = vld [vmem:[#allocation7 + $0x8] sm:$0xff]
    %v54 = vld [vmem:[#allocation7 + $0x10] sm:$0xff]
    %v55 = vld [vmem:[#allocation7 + $0x18] sm:$0xff]
    %v56 = vld [vmem:[#allocation7 + $0x20] sm:$0xff]
    %v57 = vld [vmem:[#allocation7 + $0x28] sm:$0xff]
    %v58 = vld [vmem:[#allocation7 + $0x30] sm:$0xff]
    %v59 = vld [vmem:[#allocation7 + $0x38] sm:$0xff]
    %v60 = vld [vmem:[#allocation7 + $0x40] sm:$0xff]
    %v61 = vld [vmem:[#allocation7 + $0x48] sm:$0xff]
    %v62 = vld [vmem:[#allocation7 + $0x50] sm:$0xff]
    %v63 = vld [vmem:[#allocation7 + $0x58] sm:$0xff]
    %v64 = vld [vmem:[#allocation7 + $0x60] sm:$0xff]
    %v65 = vld [vmem:[#allocation7 + $0x68] sm:$0xff]
    %v66 = vld [vmem:[#allocation7 + $0x70] sm:$0xff]
    %v67 = vld [vmem:[#allocation7 + $0x78] sm:$0xff]
    %v68 = vld [vmem:[#allocation7 + $0x80] sm:$0xff]
    %v69 = vld [vmem:[#allocation7 + $0x88] sm:$0xff]
    %v70 = vld [vmem:[#allocation7 + $0x90] sm:$0xff]
    %v71 = vld [vmem:[#allocation7 + $0x98] sm:$0xff]
    %v72 = vld [vmem:[#allocation7 + $0xa0] sm:$0xff]
    %v73 = vld [vmem:[#allocation7 + $0xa8] sm:$0xff]
    %v74 = vld [vmem:[#allocation7 + $0xb0] sm:$0xff]
    %v75 = vld [vmem:[#allocation7 + $0xb8] sm:$0xff]
    %v76 = vld [vmem:[#allocation7 + $0xc0] sm:$0xff]
    %v77 = vld [vmem:[#allocation7 + $0xc8] sm:$0xff]
    %v78 = vld [vmem:[#allocation7 + $0xd0] sm:$0xff]
    %v79 = vld [vmem:[#allocation7 + $0xd8] sm:$0xff]
    %v80 = vld [vmem:[#allocation7 + $0xe0] sm:$0xff]
    %v81 = vld [vmem:[#allocation7 + $0xe8] sm:$0xff]
    %v82 = vld [vmem:[#allocation7 + $0xf0] sm:$0xff]
    %v83 = vld [vmem:[#allocation7 + $0xf8] sm:$0xff]
    %v84 = vld [vmem:[#allocation2] sm:$0xff]
    %v85 = vld [vmem:[#allocation3] sm:$0xff]
    %v86 = vld [vmem:[#allocation4] sm:$0xff]
    %v87 = vld [vmem:[#allocation4 + $0x8] sm:$0xff]
    %v88 = vunpack.c.l.bf16 %v86
    %v89 = vunpack.c.h.bf16 %v86
    %v90 = vunpack.c.l.bf16 %v87
    %v91 = vunpack.c.h.bf16 %v87
    %v92 = vpack.c.bf16 %v84, %v84
    %v125 = vunpack.c.l.b16 %v52
    %v126 = vunpack.c.h.b16 %v52
    %v127 = vunpack.c.l.b16 %v53
    %v128 = vunpack.c.h.b16 %v53
    %v129 = vunpack.c.l.b16 %v54
    %v130 = vunpack.c.h.b16 %v54
    %v131 = vunpack.c.l.b16 %v55
    %v132 = vunpack.c.h.b16 %v55
    %v133 = vunpack.c.l.b16 %v56
    %v134 = vunpack.c.h.b16 %v56
    %v135 = vunpack.c.l.b16 %v57
    %v136 = vunpack.c.h.b16 %v57
    %v137 = vunpack.c.l.b16 %v58
    %v138 = vunpack.c.h.b16 %v58
    %v139 = vunpack.c.l.b16 %v59
    %v140 = vunpack.c.h.b16 %v59
    %v141 = vunpack.c.l.b16 %v60
    %v142 = vunpack.c.h.b16 %v60
    %v143 = vunpack.c.l.b16 %v61
    %v144 = vunpack.c.h.b16 %v61
    %v145 = vunpack.c.l.b16 %v62
    %v146 = vunpack.c.h.b16 %v62
    %v147 = vunpack.c.l.b16 %v63
    %v148 = vunpack.c.h.b16 %v63
    %v149 = vunpack.c.l.b16 %v64
    %v150 = vunpack.c.h.b16 %v64
    %v151 = vunpack.c.l.b16 %v65
    %v152 = vunpack.c.h.b16 %v65
    %v153 = vunpack.c.l.b16 %v66
    %v154 = vunpack.c.h.b16 %v66
    %v155 = vunpack.c.l.b16 %v67
    %v156 = vunpack.c.h.b16 %v67
    %v157 = vunpack.c.l.b16 %v68
    %v158 = vunpack.c.h.b16 %v68
    %v159 = vunpack.c.l.b16 %v69
    %v160 = vunpack.c.h.b16 %v69
    %v161 = vunpack.c.l.b16 %v70
    %v162 = vunpack.c.h.b16 %v70
    %v163 = vunpack.c.l.b16 %v71
    %v164 = vunpack.c.h.b16 %v71
    %v165 = vunpack.c.l.b16 %v72
    %v166 = vunpack.c.h.b16 %v72
    %v167 = vunpack.c.l.b16 %v73
    %v168 = vunpack.c.h.b16 %v73
    %v169 = vunpack.c.l.b16 %v74
    %v170 = vunpack.c.h.b16 %v74
    %v171 = vunpack.c.l.b16 %v75
    %v172 = vunpack.c.h.b16 %v75
    %v173 = vunpack.c.l.b16 %v76
    %v174 = vunpack.c.h.b16 %v76
    %v175 = vunpack.c.l.b16 %v77
    %v176 = vunpack.c.h.b16 %v77
    %v177 = vunpack.c.l.b16 %v78
    %v178 = vunpack.c.h.b16 %v78
    %v179 = vunpack.c.l.b16 %v79
    %v180 = vunpack.c.h.b16 %v79
    %v181 = vunpack.c.l.b16 %v80
    %v182 = vunpack.c.h.b16 %v80
    %v183 = vunpack.c.l.b16 %v81
    %v184 = vunpack.c.h.b16 %v81
    %v185 = vunpack.c.l.b16 %v82
    %v186 = vunpack.c.h.b16 %v82
    %v187 = vunpack.c.l.b16 %v83
    %v188 = vunpack.c.h.b16 %v83
    %v189 = vpack.c.b16 %v129, %v125
    %v190 = vpack.c.b16 %v130, %v126
    %v191 = vpack.c.b16 %v131, %v127
    %v192 = vpack.c.b16 %v132, %v128
    %v193 = vpack.c.b16 %v137, %v133
    %v194 = vpack.c.b16 %v138, %v134
    %v195 = vpack.c.b16 %v139, %v135
    %v196 = vpack.c.b16 %v140, %v136
    %v197 = vpack.c.b16 %v145, %v141
    %v198 = vpack.c.b16 %v146, %v142
    %v199 = vpack.c.b16 %v147, %v143
    %v200 = vpack.c.b16 %v148, %v144
    %v201 = vpack.c.b16 %v153, %v149
    %v202 = vpack.c.b16 %v154, %v150
    %v203 = vpack.c.b16 %v155, %v151
    %v204 = vpack.c.b16 %v156, %v152
    %v205 = vpack.c.b16 %v161, %v157
    %v206 = vpack.c.b16 %v162, %v158
    %v207 = vpack.c.b16 %v163, %v159
    %v208 = vpack.c.b16 %v164, %v160
    %v209 = vpack.c.b16 %v169, %v165
    %v210 = vpack.c.b16 %v170, %v166
    %v211 = vpack.c.b16 %v171, %v167
    %v212 = vpack.c.b16 %v172, %v168
    %v213 = vpack.c.b16 %v177, %v173
    %v214 = vpack.c.b16 %v178, %v174
    %v215 = vpack.c.b16 %v179, %v175
    %v216 = vpack.c.b16 %v180, %v176
    %v217 = vpack.c.b16 %v185, %v181
    %v218 = vpack.c.b16 %v186, %v182
    %v219 = vpack.c.b16 %v187, %v183
    %v220 = vpack.c.b16 %v188, %v184
    %253 = vmatprep.subr.bf16.mxu0 %v190
    %254 = vmatpush1.bf16.msra.mxu0 %v189
    %255 = vmatprep.subr.bf16.mxu0 %v194
    %256 = vmatpush1.bf16.msra.mxu0 %v193
    %257 = vmatprep.subr.bf16.mxu0 %v198
    %258 = vmatpush1.bf16.msra.mxu0 %v197
    %259 = vmatprep.subr.bf16.mxu0 %v202
    %260 = vmatpush1.bf16.msra.mxu0 %v201
    %261 = vmatprep.subr.bf16.mxu0 %v206
    %262 = vmatpush1.bf16.msra.mxu0 %v205
    %263 = vmatprep.subr.bf16.mxu0 %v210
    %264 = vmatpush1.bf16.msra.mxu0 %v209
    %265 = vmatprep.subr.bf16.mxu0 %v214
    %266 = vmatpush1.bf16.msra.mxu0 %v213
    %267 = vmatprep.subr.bf16.mxu0 %v218
    %268 = vmatpush1.bf16.msra.mxu0 %v217
    %269 = vmatprep.subr.bf16.mxu0 0
    %270 = vmatpush1.bf16.msra.mxu0 0
    %271 = vmatprep.subr.bf16.mxu0 0
    %272 = vmatpush1.bf16.msra.mxu0 0
    %273 = vmatprep.subr.bf16.mxu0 0
    %274 = vmatpush1.bf16.msra.mxu0 0
    %275 = vmatprep.subr.bf16.mxu0 0
    %276 = vmatpush1.bf16.msra.mxu0 0
    %277 = vmatprep.subr.bf16.mxu0 0
    %278 = vmatpush1.bf16.msra.mxu0 0
    %279 = vmatprep.subr.bf16.mxu0 0
    %280 = vmatpush1.bf16.msra.mxu0 0
    %281 = vmatprep.subr.bf16.mxu0 0
    %282 = vmatpush1.bf16.msra.mxu0 0
    %283 = vmatprep.subr.bf16.mxu0 0
    %284 = vmatpush1.bf16.msra.mxu0 0
    %285 = vmatprep.mubr.bf16.mxu0 0
    %286 = vmatmul.mubr.bf16.gmra.mrb[0].mxu0 %v92
    %v287 = vpop.f32.mrb[0].mxu0
    %v288 = vadd.f32 0.0, %v287
    %v289 = vpop.f32.mrb[0].mxu0
    %v290 = vadd.f32 0.0, %v289
    %v291 = vpop.f32.mrb[0].mxu0
    %v292 = vpop.f32.mrb[0].mxu0
    %293 = vdwg.mxu0
    %294 = vmatprep.subr.bf16.mxu0 %v192
    %295 = vmatpush1.bf16.msra.mxu0 %v191
    %296 = vmatprep.subr.bf16.mxu0 %v196
    %297 = vmatpush1.bf16.msra.mxu0 %v195
    %298 = vmatprep.subr.bf16.mxu0 %v200
    %299 = vmatpush1.bf16.msra.mxu0 %v199
    %300 = vmatprep.subr.bf16.mxu0 %v204
    %301 = vmatpush1.bf16.msra.mxu0 %v203
    %302 = vmatprep.subr.bf16.mxu0 %v208
    %303 = vmatpush1.bf16.msra.mxu0 %v207
    %304 = vmatprep.subr.bf16.mxu0 %v212
    %305 = vmatpush1.bf16.msra.mxu0 %v211
    %306 = vmatprep.subr.bf16.mxu0 %v216
    %307 = vmatpush1.bf16.msra.mxu0 %v215
    %308 = vmatprep.subr.bf16.mxu0 %v220
    %309 = vmatpush1.bf16.msra.mxu0 %v219
    %310 = vmatprep.subr.bf16.mxu0 0
    %311 = vmatpush1.bf16.msra.mxu0 0
    %312 = vmatprep.subr.bf16.mxu0 0
    %313 = vmatpush1.bf16.msra.mxu0 0
    %314 = vmatprep.subr.bf16.mxu0 0
    %315 = vmatpush1.bf16.msra.mxu0 0
    %316 = vmatprep.subr.bf16.mxu0 0
    %317 = vmatpush1.bf16.msra.mxu0 0
    %318 = vmatprep.subr.bf16.mxu0 0
    %319 = vmatpush1.bf16.msra.mxu0 0
    %320 = vmatprep.subr.bf16.mxu0 0
    %321 = vmatpush1.bf16.msra.mxu0 0
    %322 = vmatprep.subr.bf16.mxu0 0
    %323 = vmatpush1.bf16.msra.mxu0 0
    %324 = vmatprep.subr.bf16.mxu0 0
    %325 = vmatpush1.bf16.msra.mxu0 0
    %326 = vmatprep.mubr.bf16.mxu0 0
    %327 = vmatmul.mubr.bf16.gmra.mrb[0].mxu0 %v92
    %v328 = vpop.f32.mrb[0].mxu0
    %v329 = vadd.f32 0.0, %v328
    %v330 = vpop.f32.mrb[0].mxu0
    %v331 = vadd.f32 0.0, %v330
    %v332 = vpop.f32.mrb[0].mxu0
    %v333 = vpop.f32.mrb[0].mxu0
    %334 = vdwg.mxu0
    %v335 = vadd.f32 %v88, %v288
    %v336 = vadd.f32 %v89, %v290
    %v337 = vadd.f32 %v90, %v329
    %v338 = vadd.f32 %v91, %v331
    %v339 = vxor.u32 %v335, 2147483648
    %v340 = vxor.u32 %v336, 2147483648
    %v341 = vxor.u32 %v337, 2147483648
    %v342 = vmul.f32 %v339, 1.442695
    %v343 = vpow.pop %v342
    %v344 = vmul.f32 %v340, 1.442695
    %v345 = vpow.pop %v344
    %v346 = vmul.f32 %v341, 1.442695
    %v347 = vpow.pop %v346
    %v348 = vadd.f32 %v343, 1.0
    %v349 = vadd.f32 %v345, 1.0
    %v350 = vadd.f32 %v347, 1.0
    %v351 = vrcp.pop %v348
    %v352 = vmul.f32 1.0, %v351
    %v353 = vrcp.pop %v349
    %v354 = vmul.f32 1.0, %v353
    %v355 = vrcp.pop %v350
    %v356 = vmul.f32 1.0, %v355
    %v357 = vtanh.pop %v338
    %v358 = vmul.f32 %v354, %v85
    %v359 = vmul.f32 %v352, %v357
    %v360 = vadd.f32 %v358, %v359
    %v361 = vtanh.pop %v360
    %v362 = vmul.f32 %v356, %v361
    %v363 = vstv %s51
    %vm364 = vcmp.lt.s32.totalorder %v363, %v50
    %v365 = vsel %vm364, 1, 0
    %366 = vset.pattern.permute.xlu0 0
    %367 = vperm.xlu0 %366, %v365
    %v368 = vpop.permute.xlu0 %367
    %vm369 = vcmp.eq.s32.totalorder %v368, 1
    %v370 = vsel %vm369, %v362, 0.0
    %371 = vst [vmem:[#allocation9] sm:$0xff] %v370
    %s372 = scalar_lea.vmem [#allocation4], 16
    %v373 = vld [vmem:[%s372] sm:$0xff]
    %v374 = vld [vmem:[%s372 + $0x8] sm:$0xff]
    %v375 = vunpack.c.l.bf16 %v373
    %v376 = vunpack.c.h.bf16 %v373
    %v377 = vunpack.c.l.bf16 %v374
    %v378 = vunpack.c.h.bf16 %v374
    %v379 = vpack.c.bf16 %v362, %v362
    %380 = vmatprep.subr.bf16.mxu0 %v190
    %381 = vmatpush1.bf16.msra.mxu0 %v189
    %382 = vmatprep.subr.bf16.mxu0 %v194
    %383 = vmatpush1.bf16.msra.mxu0 %v193
    %384 = vmatprep.subr.bf16.mxu0 %v198
    %385 = vmatpush1.bf16.msra.mxu0 %v197
    %386 = vmatprep.subr.bf16.mxu0 %v202
    %387 = vmatpush1.bf16.msra.mxu0 %v201
    %388 = vmatprep.subr.bf16.mxu0 %v206
    %389 = vmatpush1.bf16.msra.mxu0 %v205
    %390 = vmatprep.subr.bf16.mxu0 %v210
    %391 = vmatpush1.bf16.msra.mxu0 %v209
    %392 = vmatprep.subr.bf16.mxu0 %v214
    %393 = vmatpush1.bf16.msra.mxu0 %v213
    %394 = vmatprep.subr.bf16.mxu0 %v218
    %395 = vmatpush1.bf16.msra.mxu0 %v217
    %396 = vmatprep.subr.bf16.mxu0 0
    %397 = vmatpush1.bf16.msra.mxu0 0
    %398 = vmatprep.subr.bf16.mxu0 0
    %399 = vmatpush1.bf16.msra.mxu0 0
    %400 = vmatprep.subr.bf16.mxu0 0
    %401 = vmatpush1.bf16.msra.mxu0 0
    %402 = vmatprep.subr.bf16.mxu0 0
    %403 = vmatpush1.bf16.msra.mxu0 0
    %404 = vmatprep.subr.bf16.mxu0 0
    %405 = vmatpush1.bf16.msra.mxu0 0
    %406 = vmatprep.subr.bf16.mxu0 0
    %407 = vmatpush1.bf16.msra.mxu0 0
    %408 = vmatprep.subr.bf16.mxu0 0
    %409 = vmatpush1.bf16.msra.mxu0 0
    %410 = vmatprep.subr.bf16.mxu0 0
    %411 = vmatpush1.bf16.msra.mxu0 0
    %412 = vmatprep.mubr.bf16.mxu0 0
    %413 = vmatmul.mubr.bf16.gmra.mrb[0].mxu0 %v379
    %v414 = vpop.f32.mrb[0].mxu0
    %v415 = vadd.f32 0.0, %v414
    %v416 = vpop.f32.mrb[0].mxu0
    %v417 = vadd.f32 0.0, %v416
    %v418 = vpop.f32.mrb[0].mxu0
    %v419 = vpop.f32.mrb[0].mxu0
    %420 = vdwg.mxu0
    %421 = vmatprep.subr.bf16.mxu0 %v192
    %422 = vmatpush1.bf16.msra.mxu0 %v191
    %423 = vmatprep.subr.bf16.mxu0 %v196
    %424 = vmatpush1.bf16.msra.mxu0 %v195
    %425 = vmatprep.subr.bf16.mxu0 %v200
    %426 = vmatpush1.bf16.msra.mxu0 %v199
    %427 = vmatprep.subr.bf16.mxu0 %v204
    %428 = vmatpush1.bf16.msra.mxu0 %v203
    %429 = vmatprep.subr.bf16.mxu0 %v208
    %430 = vmatpush1.bf16.msra.mxu0 %v207
    %431 = vmatprep.subr.bf16.mxu0 %v212
    %432 = vmatpush1.bf16.msra.mxu0 %v211
    %433 = vmatprep.subr.bf16.mxu0 %v216
    %434 = vmatpush1.bf16.msra.mxu0 %v215
    %435 = vmatprep.subr.bf16.mxu0 %v220
    %436 = vmatpush1.bf16.msra.mxu0 %v219
    %437 = vmatprep.subr.bf16.mxu0 0
    %438 = vmatpush1.bf16.msra.mxu0 0
    %439 = vmatprep.subr.bf16.mxu0 0
    %440 = vmatpush1.bf16.msra.mxu0 0
    %441 = vmatprep.subr.bf16.mxu0 0
    %442 = vmatpush1.bf16.msra.mxu0 0
    %443 = vmatprep.subr.bf16.mxu0 0
    %444 = vmatpush1.bf16.msra.mxu0 0
    %445 = vmatprep.subr.bf16.mxu0 0
    %446 = vmatpush1.bf16.msra.mxu0 0
    %447 = vmatprep.subr.bf16.mxu0 0
    %448 = vmatpush1.bf16.msra.mxu0 0
    %449 = vmatprep.subr.bf16.mxu0 0
    %450 = vmatpush1.bf16.msra.mxu0 0
    %451 = vmatprep.subr.bf16.mxu0 0
    %452 = vmatpush1.bf16.msra.mxu0 0
    %453 = vmatprep.mubr.bf16.mxu0 0
    %454 = vmatmul.mubr.bf16.gmra.mrb[0].mxu0 %v379
    %v455 = vpop.f32.mrb[0].mxu0
    %v456 = vadd.f32 0.0, %v455
    %v457 = vpop.f32.mrb[0].mxu0
    %v458 = vadd.f32 0.0, %v457
    %v459 = vpop.f32.mrb[0].mxu0
    %v460 = vpop.f32.mrb[0].mxu0
    %461 = vdwg.mxu0
    %v462 = vadd.f32 %v375, %v415
    %v463 = vadd.f32 %v376, %v417
    %v464 = vadd.f32 %v377, %v456
    %v465 = vadd.f32 %v378, %v458
    %v466 = vxor.u32 %v462, 2147483648
    %v467 = vxor.u32 %v463, 2147483648
    %v468 = vxor.u32 %v464, 2147483648
    %v469 = vmul.f32 %v466, 1.442695
    %v470 = vpow.pop %v469
    %v471 = vmul.f32 %v467, 1.442695
    %v472 = vpow.pop %v471
    %v473 = vmul.f32 %v468, 1.442695
    %v474 = vpow.pop %v473
    %v475 = vadd.f32 %v470, 1.0
    %v476 = vadd.f32 %v472, 1.0
    %v477 = vadd.f32 %v474, 1.0
    %v478 = vrcp.pop %v475
    %v479 = vmul.f32 1.0, %v478
    %v480 = vrcp.pop %v476
    %v481 = vmul.f32 1.0, %v480
    %v482 = vrcp.pop %v477
    %v483 = vmul.f32 1.0, %v482
    %v484 = vtanh.pop %v465
    %v485 = vmul.f32 %v481, %v360
    %v486 = vmul.f32 %v479, %v484
    %v487 = vadd.f32 %v485, %v486
    %v488 = vtanh.pop %v487
    %v489 = vmul.f32 %v483, %v488
    %s490 = sadd.s32 %s51, 1
    %v491 = vstv %s490
    %vm492 = vcmp.lt.s32.totalorder %v491, %v50
    %v493 = vsel %vm492, 1, 0
    %494 = vset.pattern.permute.xlu0 0
    %495 = vperm.xlu0 %494, %v493
    %v496 = vpop.permute.xlu0 %495
    %vm497 = vcmp.eq.s32.totalorder %v496, 1
    %v498 = vsel %vm497, %v489, 0.0
    %s499 = scalar_lea.vmem [#allocation9], 8
    %500 = vst [vmem:[%s499] sm:$0xff] %v498
    %s501 = scalar_lea.vmem [#allocation4], 32
    %v502 = vld [vmem:[%s501] sm:$0xff]
    %v503 = vld [vmem:[%s501 + $0x8] sm:$0xff]
    %v504 = vunpack.c.l.bf16 %v502
    %v505 = vunpack.c.h.bf16 %v502
    %v506 = vunpack.c.l.bf16 %v503
    %v507 = vunpack.c.h.bf16 %v503
    %v508 = vpack.c.bf16 %v489, %v489
    %509 = vmatprep.subr.bf16.mxu0 %v190
    %510 = vmatpush1.bf16.msra.mxu0 %v189
    %511 = vmatprep.subr.bf16.mxu0 %v194
    %512 = vmatpush1.bf16.msra.mxu0 %v193
    %513 = vmatprep.subr.bf16.mxu0 %v198
    %514 = vmatpush1.bf16.msra.mxu0 %v197
    %515 = vmatprep.subr.bf16.mxu0 %v202
    %516 = vmatpush1.bf16.msra.mxu0 %v201
    %517 = vmatprep.subr.bf16.mxu0 %v206
    %518 = vmatpush1.bf16.msra.mxu0 %v205
    %519 = vmatprep.subr.bf16.mxu0 %v210
    %520 = vmatpush1.bf16.msra.mxu0 %v209
    %521 = vmatprep.subr.bf16.mxu0 %v214
    %522 = vmatpush1.bf16.msra.mxu0 %v213
    %523 = vmatprep.subr.bf16.mxu0 %v218
    %524 = vmatpush1.bf16.msra.mxu0 %v217
    %525 = vmatprep.subr.bf16.mxu0 0
    %526 = vmatpush1.bf16.msra.mxu0 0
    %527 = vmatprep.subr.bf16.mxu0 0
    %528 = vmatpush1.bf16.msra.mxu0 0
    %529 = vmatprep.subr.bf16.mxu0 0
    %530 = vmatpush1.bf16.msra.mxu0 0
    %531 = vmatprep.subr.bf16.mxu0 0
    %532 = vmatpush1.bf16.msra.mxu0 0
    %533 = vmatprep.subr.bf16.mxu0 0
    %534 = vmatpush1.bf16.msra.mxu0 0
    %535 = vmatprep.subr.bf16.mxu0 0
    %536 = vmatpush1.bf16.msra.mxu0 0
    %537 = vmatprep.subr.bf16.mxu0 0
    %538 = vmatpush1.bf16.msra.mxu0 0
    %539 = vmatprep.subr.bf16.mxu0 0
    %540 = vmatpush1.bf16.msra.mxu0 0
    %541 = vmatprep.mubr.bf16.mxu0 0
    %542 = vmatmul.mubr.bf16.gmra.mrb[0].mxu0 %v508
    %v543 = vpop.f32.mrb[0].mxu0
    %v544 = vadd.f32 0.0, %v543
    %v545 = vpop.f32.mrb[0].mxu0
    %v546 = vadd.f32 0.0, %v545
    %v547 = vpop.f32.mrb[0].mxu0
    %v548 = vpop.f32.mrb[0].mxu0
    %549 = vdwg.mxu0
    %550 = vmatprep.subr.bf16.mxu0 %v192
    %551 = vmatpush1.bf16.msra.mxu0 %v191
    %552 = vmatprep.subr.bf16.mxu0 %v196
    %553 = vmatpush1.bf16.msra.mxu0 %v195
    %554 = vmatprep.subr.bf16.mxu0 %v200
    %555 = vmatpush1.bf16.msra.mxu0 %v199
    %556 = vmatprep.subr.bf16.mxu0 %v204
    %557 = vmatpush1.bf16.msra.mxu0 %v203
    %558 = vmatprep.subr.bf16.mxu0 %v208
    %559 = vmatpush1.bf16.msra.mxu0 %v207
    %560 = vmatprep.subr.bf16.mxu0 %v212
    %561 = vmatpush1.bf16.msra.mxu0 %v211
    %562 = vmatprep.subr.bf16.mxu0 %v216
    %563 = vmatpush1.bf16.msra.mxu0 %v215
    %564 = vmatprep.subr.bf16.mxu0 %v220
    %565 = vmatpush1.bf16.msra.mxu0 %v219
    %566 = vmatprep.subr.bf16.mxu0 0
    %567 = vmatpush1.bf16.msra.mxu0 0
    %568 = vmatprep.subr.bf16.mxu0 0
    %569 = vmatpush1.bf16.msra.mxu0 0
    %570 = vmatprep.subr.bf16.mxu0 0
    %571 = vmatpush1.bf16.msra.mxu0 0
    %572 = vmatprep.subr.bf16.mxu0 0
    %573 = vmatpush1.bf16.msra.mxu0 0
    %574 = vmatprep.subr.bf16.mxu0 0
    %575 = vmatpush1.bf16.msra.mxu0 0
    %576 = vmatprep.subr.bf16.mxu0 0
    %577 = vmatpush1.bf16.msra.mxu0 0
    %578 = vmatprep.subr.bf16.mxu0 0
    %579 = vmatpush1.bf16.msra.mxu0 0
    %580 = vmatprep.subr.bf16.mxu0 0
    %581 = vmatpush1.bf16.msra.mxu0 0
    %582 = vmatprep.mubr.bf16.mxu0 0
    %583 = vmatmul.mubr.bf16.gmra.mrb[0].mxu0 %v508
    %v584 = vpop.f32.mrb[0].mxu0
    %v585 = vadd.f32 0.0, %v584
    %v586 = vpop.f32.mrb[0].mxu0
    %v587 = vadd.f32 0.0, %v586
    %v588 = vpop.f32.mrb[0].mxu0
    %v589 = vpop.f32.mrb[0].mxu0
    %590 = vdwg.mxu0
    %v591 = vadd.f32 %v504, %v544
    %v592 = vadd.f32 %v505, %v546
    %v593 = vadd.f32 %v506, %v585
    %v594 = vadd.f32 %v507, %v587
    %v595 = vxor.u32 %v591, 2147483648
    %v596 = vxor.u32 %v592, 2147483648
    %v597 = vxor.u32 %v593, 2147483648
    %v598 = vmul.f32 %v595, 1.442695
    %v599 = vpow.pop %v598
    %v600 = vmul.f32 %v596, 1.442695
    %v601 = vpow.pop %v600
    %v602 = vmul.f32 %v597, 1.442695
    %v603 = vpow.pop %v602
    %v604 = vadd.f32 %v599, 1.0
    %v605 = vadd.f32 %v601, 1.0
    %v606 = vadd.f32 %v603, 1.0
    %v607 = vrcp.pop %v604
    %v608 = vmul.f32 1.0, %v607
    %v609 = vrcp.pop %v605
    %v610 = vmul.f32 1.0, %v609
    %v611 = vrcp.pop %v606
    %v612 = vmul.f32 1.0, %v611
    %v613 = vtanh.pop %v594
    %v614 = vmul.f32 %v610, %v487
    %v615 = vmul.f32 %v608, %v613
    %v616 = vadd.f32 %v614, %v615
    %v617 = vtanh.pop %v616
    %v618 = vmul.f32 %v612, %v617
    %s619 = sadd.s32 %s51, 2
    %v620 = vstv %s619
    %vm621 = vcmp.lt.s32.totalorder %v620, %v50
    %v622 = vsel %vm621, 1, 0
    %623 = vset.pattern.permute.xlu0 0
    %624 = vperm.xlu0 %623, %v622
    %v625 = vpop.permute.xlu0 %624
    %vm626 = vcmp.eq.s32.totalorder %v625, 1
    %v627 = vsel %vm626, %v618, 0.0
    %s628 = scalar_lea.vmem [#allocation9], 16
    %629 = vst [vmem:[%s628] sm:$0xff] %v627
    %s630 = scalar_lea.vmem [#allocation4], 48
    %v631 = vld [vmem:[%s630] sm:$0xff]
    %v632 = vld [vmem:[%s630 + $0x8] sm:$0xff]
    %v633 = vunpack.c.l.bf16 %v631
    %v634 = vunpack.c.h.bf16 %v631
    %v635 = vunpack.c.l.bf16 %v632
    %v636 = vunpack.c.h.bf16 %v632
    %v637 = vpack.c.bf16 %v618, %v618
    %638 = vmatprep.subr.bf16.mxu0 %v190
    %639 = vmatpush1.bf16.msra.mxu0 %v189
    %640 = vmatprep.subr.bf16.mxu0 %v194
    %641 = vmatpush1.bf16.msra.mxu0 %v193
    %642 = vmatprep.subr.bf16.mxu0 %v198
    %643 = vmatpush1.bf16.msra.mxu0 %v197
    %644 = vmatprep.subr.bf16.mxu0 %v202
    %645 = vmatpush1.bf16.msra.mxu0 %v201
    %646 = vmatprep.subr.bf16.mxu0 %v206
    %647 = vmatpush1.bf16.msra.mxu0 %v205
    %648 = vmatprep.subr.bf16.mxu0 %v210
    %649 = vmatpush1.bf16.msra.mxu0 %v209
    %650 = vmatprep.subr.bf16.mxu0 %v214
    %651 = vmatpush1.bf16.msra.mxu0 %v213
    %652 = vmatprep.subr.bf16.mxu0 %v218
    %653 = vmatpush1.bf16.msra.mxu0 %v217
    %654 = vmatprep.subr.bf16.mxu0 0
    %655 = vmatpush1.bf16.msra.mxu0 0
    %656 = vmatprep.subr.bf16.mxu0 0
    %657 = vmatpush1.bf16.msra.mxu0 0
    %658 = vmatprep.subr.bf16.mxu0 0
    %659 = vmatpush1.bf16.msra.mxu0 0
    %660 = vmatprep.subr.bf16.mxu0 0
    %661 = vmatpush1.bf16.msra.mxu0 0
    %662 = vmatprep.subr.bf16.mxu0 0
    %663 = vmatpush1.bf16.msra.mxu0 0
    %664 = vmatprep.subr.bf16.mxu0 0
    %665 = vmatpush1.bf16.msra.mxu0 0
    %666 = vmatprep.subr.bf16.mxu0 0
    %667 = vmatpush1.bf16.msra.mxu0 0
    %668 = vmatprep.subr.bf16.mxu0 0
    %669 = vmatpush1.bf16.msra.mxu0 0
    %670 = vmatprep.mubr.bf16.mxu0 0
    %671 = vmatmul.mubr.bf16.gmra.mrb[0].mxu0 %v637
    %v672 = vpop.f32.mrb[0].mxu0
    %v673 = vadd.f32 0.0, %v672
    %v674 = vpop.f32.mrb[0].mxu0
    %v675 = vadd.f32 0.0, %v674
    %v676 = vpop.f32.mrb[0].mxu0
    %v677 = vpop.f32.mrb[0].mxu0
    %678 = vdwg.mxu0
    %679 = vmatprep.subr.bf16.mxu0 %v192
    %680 = vmatpush1.bf16.msra.mxu0 %v191
    %681 = vmatprep.subr.bf16.mxu0 %v196
    %682 = vmatpush1.bf16.msra.mxu0 %v195
    %683 = vmatprep.subr.bf16.mxu0 %v200
    %684 = vmatpush1.bf16.msra.mxu0 %v199
    %685 = vmatprep.subr.bf16.mxu0 %v204
    %686 = vmatpush1.bf16.msra.mxu0 %v203
    %687 = vmatprep.subr.bf16.mxu0 %v208
    %688 = vmatpush1.bf16.msra.mxu0 %v207
    %689 = vmatprep.subr.bf16.mxu0 %v212
    %690 = vmatpush1.bf16.msra.mxu0 %v211
    %691 = vmatprep.subr.bf16.mxu0 %v216
    %692 = vmatpush1.bf16.msra.mxu0 %v215
    %693 = vmatprep.subr.bf16.mxu0 %v220
    %694 = vmatpush1.bf16.msra.mxu0 %v219
    %695 = vmatprep.subr.bf16.mxu0 0
    %696 = vmatpush1.bf16.msra.mxu0 0
    %697 = vmatprep.subr.bf16.mxu0 0
    %698 = vmatpush1.bf16.msra.mxu0 0
    %699 = vmatprep.subr.bf16.mxu0 0
    %700 = vmatpush1.bf16.msra.mxu0 0
    %701 = vmatprep.subr.bf16.mxu0 0
    %702 = vmatpush1.bf16.msra.mxu0 0
    %703 = vmatprep.subr.bf16.mxu0 0
    %704 = vmatpush1.bf16.msra.mxu0 0
    %705 = vmatprep.subr.bf16.mxu0 0
    %706 = vmatpush1.bf16.msra.mxu0 0
    %707 = vmatprep.subr.bf16.mxu0 0
    %708 = vmatpush1.bf16.msra.mxu0 0
    %709 = vmatprep.subr.bf16.mxu0 0
    %710 = vmatpush1.bf16.msra.mxu0 0
    %711 = vmatprep.mubr.bf16.mxu0 0
    %712 = vmatmul.mubr.bf16.gmra.mrb[0].mxu0 %v637
    %v713 = vpop.f32.mrb[0].mxu0
    %v714 = vadd.f32 0.0, %v713
    %v715 = vpop.f32.mrb[0].mxu0
    %v716 = vadd.f32 0.0, %v715
    %v717 = vpop.f32.mrb[0].mxu0
    %v718 = vpop.f32.mrb[0].mxu0
    %719 = vdwg.mxu0
    %v720 = vadd.f32 %v633, %v673
    %v721 = vadd.f32 %v634, %v675
    %v722 = vadd.f32 %v635, %v714
    %v723 = vadd.f32 %v636, %v716
    %v724 = vxor.u32 %v720, 2147483648
    %v725 = vxor.u32 %v721, 2147483648
    %v726 = vxor.u32 %v722, 2147483648
    %v727 = vmul.f32 %v724, 1.442695
    %v728 = vpow.pop %v727
    %v729 = vmul.f32 %v725, 1.442695
    %v730 = vpow.pop %v729
    %v731 = vmul.f32 %v726, 1.442695
    %v732 = vpow.pop %v731
    %v733 = vadd.f32 %v728, 1.0
    %v734 = vadd.f32 %v730, 1.0
    %v735 = vadd.f32 %v732, 1.0
    %v736 = vrcp.pop %v733
    %v737 = vmul.f32 1.0, %v736
    %v738 = vrcp.pop %v734
    %v739 = vmul.f32 1.0, %v738
    %v740 = vrcp.pop %v735
    %v741 = vmul.f32 1.0, %v740
    %v742 = vtanh.pop %v723
    %v743 = vmul.f32 %v739, %v616
    %v744 = vmul.f32 %v737, %v742
    %v745 = vadd.f32 %v743, %v744
    %v746 = vtanh.pop %v745
    %v747 = vmul.f32 %v741, %v746
    %s748 = sadd.s32 %s51, 3
    %v749 = vstv %s748
    %vm750 = vcmp.lt.s32.totalorder %v749, %v50
    %v751 = vsel %vm750, 1, 0
    %752 = vset.pattern.permute.xlu0 0
    %753 = vperm.xlu0 %752, %v751
    %v754 = vpop.permute.xlu0 %753
    %vm755 = vcmp.eq.s32.totalorder %v754, 1
    %v756 = vsel %vm755, %v747, 0.0
    %s757 = scalar_lea.vmem [#allocation9], 24
    %758 = vst [vmem:[%s757] sm:$0xff] %v756
    %s759 = scalar_lea.vmem [#allocation4], 64
    %v760 = vld [vmem:[%s759] sm:$0xff]
    %v761 = vld [vmem:[%s759 + $0x8] sm:$0xff]
    %v762 = vunpack.c.l.bf16 %v760
    %v763 = vunpack.c.h.bf16 %v760
    %v764 = vunpack.c.l.bf16 %v761
    %v765 = vunpack.c.h.bf16 %v761
    %v766 = vpack.c.bf16 %v747, %v747
    %767 = vmatprep.subr.bf16.mxu0 %v190
    %768 = vmatpush1.bf16.msra.mxu0 %v189
    %769 = vmatprep.subr.bf16.mxu0 %v194
    %770 = vmatpush1.bf16.msra.mxu0 %v193
    %771 = vmatprep.subr.bf16.mxu0 %v198
    %772 = vmatpush1.bf16.msra.mxu0 %v197
    %773 = vmatprep.subr.bf16.mxu0 %v202
    %774 = vmatpush1.bf16.msra.mxu0 %v201
    %775 = vmatprep.subr.bf16.mxu0 %v206
    %776 = vmatpush1.bf16.msra.mxu0 %v205
    %777 = vmatprep.subr.bf16.mxu0 %v210
    %778 = vmatpush1.bf16.msra.mxu0 %v209
    %779 = vmatprep.subr.bf16.mxu0 %v214
    %780 = vmatpush1.bf16.msra.mxu0 %v213
    %781 = vmatprep.subr.bf16.mxu0 %v218
    %782 = vmatpush1.bf16.msra.mxu0 %v217
    %783 = vmatprep.subr.bf16.mxu0 0
    %784 = vmatpush1.bf16.msra.mxu0 0
    %785 = vmatprep.subr.bf16.mxu0 0
    %786 = vmatpush1.bf16.msra.mxu0 0
    %787 = vmatprep.subr.bf16.mxu0 0
    %788 = vmatpush1.bf16.msra.mxu0 0
    %789 = vmatprep.subr.bf16.mxu0 0
    %790 = vmatpush1.bf16.msra.mxu0 0
    %791 = vmatprep.subr.bf16.mxu0 0
    %792 = vmatpush1.bf16.msra.mxu0 0
    %793 = vmatprep.subr.bf16.mxu0 0
    %794 = vmatpush1.bf16.msra.mxu0 0
    %795 = vmatprep.subr.bf16.mxu0 0
    %796 = vmatpush1.bf16.msra.mxu0 0
    %797 = vmatprep.subr.bf16.mxu0 0
    %798 = vmatpush1.bf16.msra.mxu0 0
    %799 = vmatprep.mubr.bf16.mxu0 0
    %800 = vmatmul.mubr.bf16.gmra.mrb[0].mxu0 %v766
    %v801 = vpop.f32.mrb[0].mxu0
    %v802 = vadd.f32 0.0, %v801
    %v803 = vpop.f32.mrb[0].mxu0
    %v804 = vadd.f32 0.0, %v803
    %v805 = vpop.f32.mrb[0].mxu0
    %v806 = vpop.f32.mrb[0].mxu0
    %807 = vdwg.mxu0
    %808 = vmatprep.subr.bf16.mxu0 %v192
    %809 = vmatpush1.bf16.msra.mxu0 %v191
    %810 = vmatprep.subr.bf16.mxu0 %v196
    %811 = vmatpush1.bf16.msra.mxu0 %v195
    %812 = vmatprep.subr.bf16.mxu0 %v200
    %813 = vmatpush1.bf16.msra.mxu0 %v199
    %814 = vmatprep.subr.bf16.mxu0 %v204
    %815 = vmatpush1.bf16.msra.mxu0 %v203
    %816 = vmatprep.subr.bf16.mxu0 %v208
    %817 = vmatpush1.bf16.msra.mxu0 %v207
    %818 = vmatprep.subr.bf16.mxu0 %v212
    %819 = vmatpush1.bf16.msra.mxu0 %v211
    %820 = vmatprep.subr.bf16.mxu0 %v216
    %821 = vmatpush1.bf16.msra.mxu0 %v215
    %822 = vmatprep.subr.bf16.mxu0 %v220
    %823 = vmatpush1.bf16.msra.mxu0 %v219
    %824 = vmatprep.subr.bf16.mxu0 0
    %825 = vmatpush1.bf16.msra.mxu0 0
    %826 = vmatprep.subr.bf16.mxu0 0
    %827 = vmatpush1.bf16.msra.mxu0 0
    %828 = vmatprep.subr.bf16.mxu0 0
    %829 = vmatpush1.bf16.msra.mxu0 0
    %830 = vmatprep.subr.bf16.mxu0 0
    %831 = vmatpush1.bf16.msra.mxu0 0
    %832 = vmatprep.subr.bf16.mxu0 0
    %833 = vmatpush1.bf16.msra.mxu0 0
    %834 = vmatprep.subr.bf16.mxu0 0
    %835 = vmatpush1.bf16.msra.mxu0 0
    %836 = vmatprep.subr.bf16.mxu0 0
    %837 = vmatpush1.bf16.msra.mxu0 0
    %838 = vmatprep.subr.bf16.mxu0 0
    %839 = vmatpush1.bf16.msra.mxu0 0
    %840 = vmatprep.mubr.bf16.mxu0 0
    %841 = vmatmul.mubr.bf16.gmra.mrb[0].mxu0 %v766
    %v842 = vpop.f32.mrb[0].mxu0
    %v843 = vadd.f32 0.0, %v842
    %v844 = vpop.f32.mrb[0].mxu0
    %v845 = vadd.f32 0.0, %v844
    %v846 = vpop.f32.mrb[0].mxu0
    %v847 = vpop.f32.mrb[0].mxu0
    %848 = vdwg.mxu0
    %v849 = vadd.f32 %v762, %v802
    %v850 = vadd.f32 %v763, %v804
    %v851 = vadd.f32 %v764, %v843
    %v852 = vadd.f32 %v765, %v845
    %v853 = vxor.u32 %v849, 2147483648
    %v854 = vxor.u32 %v850, 2147483648
    %v855 = vxor.u32 %v851, 2147483648
    %v856 = vmul.f32 %v853, 1.442695
    %v857 = vpow.pop %v856
    %v858 = vmul.f32 %v854, 1.442695
    %v859 = vpow.pop %v858
    %v860 = vmul.f32 %v855, 1.442695
    %v861 = vpow.pop %v860
    %v862 = vadd.f32 %v857, 1.0
    %v863 = vadd.f32 %v859, 1.0
    %v864 = vadd.f32 %v861, 1.0
    %v865 = vrcp.pop %v862
    %v866 = vmul.f32 1.0, %v865
    %v867 = vrcp.pop %v863
    %v868 = vmul.f32 1.0, %v867
    %v869 = vrcp.pop %v864
    %v870 = vmul.f32 1.0, %v869
    %v871 = vtanh.pop %v852
    %v872 = vmul.f32 %v868, %v745
    %v873 = vmul.f32 %v866, %v871
    %v874 = vadd.f32 %v872, %v873
    %v875 = vtanh.pop %v874
    %v876 = vmul.f32 %v870, %v875
    %s877 = sadd.s32 %s51, 4
    %v878 = vstv %s877
    %vm879 = vcmp.lt.s32.totalorder %v878, %v50
    %v880 = vsel %vm879, 1, 0
    %881 = vset.pattern.permute.xlu0 0
    %882 = vperm.xlu0 %881, %v880
    %v883 = vpop.permute.xlu0 %882
    %vm884 = vcmp.eq.s32.totalorder %v883, 1
    %v885 = vsel %vm884, %v876, 0.0
    %s886 = scalar_lea.vmem [#allocation9], 32
    %887 = vst [vmem:[%s886] sm:$0xff] %v885
    %s888 = scalar_lea.vmem [#allocation4], 80
    %v889 = vld [vmem:[%s888] sm:$0xff]
    %v890 = vld [vmem:[%s888 + $0x8] sm:$0xff]
    %v891 = vunpack.c.l.bf16 %v889
    %v892 = vunpack.c.h.bf16 %v889
    %v893 = vunpack.c.l.bf16 %v890
    %v894 = vunpack.c.h.bf16 %v890
    %v895 = vpack.c.bf16 %v876, %v876
    %896 = vmatprep.subr.bf16.mxu0 %v190
    %897 = vmatpush1.bf16.msra.mxu0 %v189
    %898 = vmatprep.subr.bf16.mxu0 %v194
    %899 = vmatpush1.bf16.msra.mxu0 %v193
    %900 = vmatprep.subr.bf16.mxu0 %v198
    %901 = vmatpush1.bf16.msra.mxu0 %v197
    %902 = vmatprep.subr.bf16.mxu0 %v202
    %903 = vmatpush1.bf16.msra.mxu0 %v201
    %904 = vmatprep.subr.bf16.mxu0 %v206
    %905 = vmatpush1.bf16.msra.mxu0 %v205
    %906 = vmatprep.subr.bf16.mxu0 %v210
    %907 = vmatpush1.bf16.msra.mxu0 %v209
    %908 = vmatprep.subr.bf16.mxu0 %v214
    %909 = vmatpush1.bf16.msra.mxu0 %v213
    %910 = vmatprep.subr.bf16.mxu0 %v218
    %911 = vmatpush1.bf16.msra.mxu0 %v217
    %912 = vmatprep.subr.bf16.mxu0 0
    %913 = vmatpush1.bf16.msra.mxu0 0
    %914 = vmatprep.subr.bf16.mxu0 0
    %915 = vmatpush1.bf16.msra.mxu0 0
    %916 = vmatprep.subr.bf16.mxu0 0
    %917 = vmatpush1.bf16.msra.mxu0 0
    %918 = vmatprep.subr.bf16.mxu0 0
    %919 = vmatpush1.bf16.msra.mxu0 0
    %920 = vmatprep.subr.bf16.mxu0 0
    %921 = vmatpush1.bf16.msra.mxu0 0
    %922 = vmatprep.subr.bf16.mxu0 0
    %923 = vmatpush1.bf16.msra.mxu0 0
    %924 = vmatprep.subr.bf16.mxu0 0
    %925 = vmatpush1.bf16.msra.mxu0 0
    %926 = vmatprep.subr.bf16.mxu0 0
    %927 = vmatpush1.bf16.msra.mxu0 0
    %928 = vmatprep.mubr.bf16.mxu0 0
    %929 = vmatmul.mubr.bf16.gmra.mrb[0].mxu0 %v895
    %v930 = vpop.f32.mrb[0].mxu0
    %v931 = vadd.f32 0.0, %v930
    %v932 = vpop.f32.mrb[0].mxu0
    %v933 = vadd.f32 0.0, %v932
    %v934 = vpop.f32.mrb[0].mxu0
    %v935 = vpop.f32.mrb[0].mxu0
    %936 = vdwg.mxu0
    %937 = vmatprep.subr.bf16.mxu0 %v192
    %938 = vmatpush1.bf16.msra.mxu0 %v191
    %939 = vmatprep.subr.bf16.mxu0 %v196
    %940 = vmatpush1.bf16.msra.mxu0 %v195
    %941 = vmatprep.subr.bf16.mxu0 %v200
    %942 = vmatpush1.bf16.msra.mxu0 %v199
    %943 = vmatprep.subr.bf16.mxu0 %v204
    %944 = vmatpush1.bf16.msra.mxu0 %v203
    %945 = vmatprep.subr.bf16.mxu0 %v208
    %946 = vmatpush1.bf16.msra.mxu0 %v207
    %947 = vmatprep.subr.bf16.mxu0 %v212
    %948 = vmatpush1.bf16.msra.mxu0 %v211
    %949 = vmatprep.subr.bf16.mxu0 %v216
    %950 = vmatpush1.bf16.msra.mxu0 %v215
    %951 = vmatprep.subr.bf16.mxu0 %v220
    %952 = vmatpush1.bf16.msra.mxu0 %v219
    %953 = vmatprep.subr.bf16.mxu0 0
    %954 = vmatpush1.bf16.msra.mxu0 0
    %955 = vmatprep.subr.bf16.mxu0 0
    %956 = vmatpush1.bf16.msra.mxu0 0
    %957 = vmatprep.subr.bf16.mxu0 0
    %958 = vmatpush1.bf16.msra.mxu0 0
    %959 = vmatprep.subr.bf16.mxu0 0
    %960 = vmatpush1.bf16.msra.mxu0 0
    %961 = vmatprep.subr.bf16.mxu0 0
    %962 = vmatpush1.bf16.msra.mxu0 0
    %963 = vmatprep.subr.bf16.mxu0 0
    %964 = vmatpush1.bf16.msra.mxu0 0
    %965 = vmatprep.subr.bf16.mxu0 0
    %966 = vmatpush1.bf16.msra.mxu0 0
    %967 = vmatprep.subr.bf16.mxu0 0
    %968 = vmatpush1.bf16.msra.mxu0 0
    %969 = vmatprep.mubr.bf16.mxu0 0
    %970 = vmatmul.mubr.bf16.gmra.mrb[0].mxu0 %v895
    %v971 = vpop.f32.mrb[0].mxu0
    %v972 = vadd.f32 0.0, %v971
    %v973 = vpop.f32.mrb[0].mxu0
    %v974 = vadd.f32 0.0, %v973
    %v975 = vpop.f32.mrb[0].mxu0
    %v976 = vpop.f32.mrb[0].mxu0
    %977 = vdwg.mxu0
    %v978 = vadd.f32 %v891, %v931
    %v979 = vadd.f32 %v892, %v933
    %v980 = vadd.f32 %v893, %v972
    %v981 = vadd.f32 %v894, %v974
    %v982 = vxor.u32 %v978, 2147483648
    %v983 = vxor.u32 %v979, 2147483648
    %v984 = vxor.u32 %v980, 2147483648
    %v985 = vmul.f32 %v982, 1.442695
    %v986 = vpow.pop %v985
    %v987 = vmul.f32 %v983, 1.442695
    %v988 = vpow.pop %v987
    %v989 = vmul.f32 %v984, 1.442695
    %v990 = vpow.pop %v989
    %v991 = vadd.f32 %v986, 1.0
    %v992 = vadd.f32 %v988, 1.0
    %v993 = vadd.f32 %v990, 1.0
    %v994 = vrcp.pop %v991
    %v995 = vmul.f32 1.0, %v994
    %v996 = vrcp.pop %v992
    %v997 = vmul.f32 1.0, %v996
    %v998 = vrcp.pop %v993
    %v999 = vmul.f32 1.0, %v998
    %v1000 = vtanh.pop %v981
    %v1001 = vmul.f32 %v997, %v874
    %v1002 = vmul.f32 %v995, %v1000
    %v1003 = vadd.f32 %v1001, %v1002
    %v1004 = vtanh.pop %v1003
    %v1005 = vmul.f32 %v999, %v1004
    %s1006 = sadd.s32 %s51, 5
    %v1007 = vstv %s1006
    %vm1008 = vcmp.lt.s32.totalorder %v1007, %v50
    %v1009 = vsel %vm1008, 1, 0
    %1010 = vset.pattern.permute.xlu0 0
    %1011 = vperm.xlu0 %1010, %v1009
    %v1012 = vpop.permute.xlu0 %1011
    %vm1013 = vcmp.eq.s32.totalorder %v1012, 1
    %v1014 = vsel %vm1013, %v1005, 0.0
    %s1015 = scalar_lea.vmem [#allocation9], 40
    %1016 = vst [vmem:[%s1015] sm:$0xff] %v1014
    %s1017 = scalar_lea.vmem [#allocation4], 96
    %v1018 = vld [vmem:[%s1017] sm:$0xff]
    %v1019 = vld [vmem:[%s1017 + $0x8] sm:$0xff]
    %v1020 = vunpack.c.l.bf16 %v1018
    %v1021 = vunpack.c.h.bf16 %v1018
    %v1022 = vunpack.c.l.bf16 %v1019
    %v1023 = vunpack.c.h.bf16 %v1019
    %v1024 = vpack.c.bf16 %v1005, %v1005
    %1025 = vmatprep.subr.bf16.mxu0 %v190
    %1026 = vmatpush1.bf16.msra.mxu0 %v189
    %1027 = vmatprep.subr.bf16.mxu0 %v194
    %1028 = vmatpush1.bf16.msra.mxu0 %v193
    %1029 = vmatprep.subr.bf16.mxu0 %v198
    %1030 = vmatpush1.bf16.msra.mxu0 %v197
    %1031 = vmatprep.subr.bf16.mxu0 %v202
    %1032 = vmatpush1.bf16.msra.mxu0 %v201
    %1033 = vmatprep.subr.bf16.mxu0 %v206
    %1034 = vmatpush1.bf16.msra.mxu0 %v205
    %1035 = vmatprep.subr.bf16.mxu0 %v210
    %1036 = vmatpush1.bf16.msra.mxu0 %v209
    %1037 = vmatprep.subr.bf16.mxu0 %v214
    %1038 = vmatpush1.bf16.msra.mxu0 %v213
    %1039 = vmatprep.subr.bf16.mxu0 %v218
    %1040 = vmatpush1.bf16.msra.mxu0 %v217
    %1041 = vmatprep.subr.bf16.mxu0 0
    %1042 = vmatpush1.bf16.msra.mxu0 0
    %1043 = vmatprep.subr.bf16.mxu0 0
    %1044 = vmatpush1.bf16.msra.mxu0 0
    %1045 = vmatprep.subr.bf16.mxu0 0
    %1046 = vmatpush1.bf16.msra.mxu0 0
    %1047 = vmatprep.subr.bf16.mxu0 0
    %1048 = vmatpush1.bf16.msra.mxu0 0
    %1049 = vmatprep.subr.bf16.mxu0 0
    %1050 = vmatpush1.bf16.msra.mxu0 0
    %1051 = vmatprep.subr.bf16.mxu0 0
    %1052 = vmatpush1.bf16.msra.mxu0 0
    %1053 = vmatprep.subr.bf16.mxu0 0
    %1054 = vmatpush1.bf16.msra.mxu0 0
    %1055 = vmatprep.subr.bf16.mxu0 0
    %1056 = vmatpush1.bf16.msra.mxu0 0
    %1057 = vmatprep.mubr.bf16.mxu0 0
    %1058 = vmatmul.mubr.bf16.gmra.mrb[0].mxu0 %v1024
    %v1059 = vpop.f32.mrb[0].mxu0
    %v1060 = vadd.f32 0.0, %v1059
    %v1061 = vpop.f32.mrb[0].mxu0
    %v1062 = vadd.f32 0.0, %v1061
    %v1063 = vpop.f32.mrb[0].mxu0
    %v1064 = vpop.f32.mrb[0].mxu0
    %1065 = vdwg.mxu0
    %1066 = vmatprep.subr.bf16.mxu0 %v192
    %1067 = vmatpush1.bf16.msra.mxu0 %v191
    %1068 = vmatprep.subr.bf16.mxu0 %v196
    %1069 = vmatpush1.bf16.msra.mxu0 %v195
    %1070 = vmatprep.subr.bf16.mxu0 %v200
    %1071 = vmatpush1.bf16.msra.mxu0 %v199
    %1072 = vmatprep.subr.bf16.mxu0 %v204
    %1073 = vmatpush1.bf16.msra.mxu0 %v203
    %1074 = vmatprep.subr.bf16.mxu0 %v208
    %1075 = vmatpush1.bf16.msra.mxu0 %v207
    %1076 = vmatprep.subr.bf16.mxu0 %v212
    %1077 = vmatpush1.bf16.msra.mxu0 %v211
    %1078 = vmatprep.subr.bf16.mxu0 %v216
    %1079 = vmatpush1.bf16.msra.mxu0 %v215
    %1080 = vmatprep.subr.bf16.mxu0 %v220
    %1081 = vmatpush1.bf16.msra.mxu0 %v219
    %1082 = vmatprep.subr.bf16.mxu0 0
    %1083 = vmatpush1.bf16.msra.mxu0 0
    %1084 = vmatprep.subr.bf16.mxu0 0
    %1085 = vmatpush1.bf16.msra.mxu0 0
    %1086 = vmatprep.subr.bf16.mxu0 0
    %1087 = vmatpush1.bf16.msra.mxu0 0
    %1088 = vmatprep.subr.bf16.mxu0 0
    %1089 = vmatpush1.bf16.msra.mxu0 0
    %1090 = vmatprep.subr.bf16.mxu0 0
    %1091 = vmatpush1.bf16.msra.mxu0 0
    %1092 = vmatprep.subr.bf16.mxu0 0
    %1093 = vmatpush1.bf16.msra.mxu0 0
    %1094 = vmatprep.subr.bf16.mxu0 0
    %1095 = vmatpush1.bf16.msra.mxu0 0
    %1096 = vmatprep.subr.bf16.mxu0 0
    %1097 = vmatpush1.bf16.msra.mxu0 0
    %1098 = vmatprep.mubr.bf16.mxu0 0
    %1099 = vmatmul.mubr.bf16.gmra.mrb[0].mxu0 %v1024
    %v1100 = vpop.f32.mrb[0].mxu0
    %v1101 = vadd.f32 0.0, %v1100
    %v1102 = vpop.f32.mrb[0].mxu0
    %v1103 = vadd.f32 0.0, %v1102
    %v1104 = vpop.f32.mrb[0].mxu0
    %v1105 = vpop.f32.mrb[0].mxu0
    %1106 = vdwg.mxu0
    %v1107 = vadd.f32 %v1020, %v1060
    %v1108 = vadd.f32 %v1021, %v1062
    %v1109 = vadd.f32 %v1022, %v1101
    %v1110 = vadd.f32 %v1023, %v1103
    %v1111 = vxor.u32 %v1107, 2147483648
    %v1112 = vxor.u32 %v1108, 2147483648
    %v1113 = vxor.u32 %v1109, 2147483648
    %v1114 = vmul.f32 %v1111, 1.442695
    %v1115 = vpow.pop %v1114
    %v1116 = vmul.f32 %v1112, 1.442695
    %v1117 = vpow.pop %v1116
    %v1118 = vmul.f32 %v1113, 1.442695
    %v1119 = vpow.pop %v1118
    %v1120 = vadd.f32 %v1115, 1.0
    %v1121 = vadd.f32 %v1117, 1.0
    %v1122 = vadd.f32 %v1119, 1.0
    %v1123 = vrcp.pop %v1120
    %v1124 = vmul.f32 1.0, %v1123
    %v1125 = vrcp.pop %v1121
    %v1126 = vmul.f32 1.0, %v1125
    %v1127 = vrcp.pop %v1122
    %v1128 = vmul.f32 1.0, %v1127
    %v1129 = vtanh.pop %v1110
    %v1130 = vmul.f32 %v1126, %v1003
    %v1131 = vmul.f32 %v1124, %v1129
    %v1132 = vadd.f32 %v1130, %v1131
    %v1133 = vtanh.pop %v1132
    %v1134 = vmul.f32 %v1128, %v1133
    %s1135 = sadd.s32 %s51, 6
    %v1136 = vstv %s1135
    %vm1137 = vcmp.lt.s32.totalorder %v1136, %v50
    %v1138 = vsel %vm1137, 1, 0
    %1139 = vset.pattern.permute.xlu0 0
    %1140 = vperm.xlu0 %1139, %v1138
    %v1141 = vpop.permute.xlu0 %1140
    %vm1142 = vcmp.eq.s32.totalorder %v1141, 1
    %v1143 = vsel %vm1142, %v1134, 0.0
    %s1144 = scalar_lea.vmem [#allocation9], 48
    %1145 = vst [vmem:[%s1144] sm:$0xff] %v1143
    %s1146 = scalar_lea.vmem [#allocation4], 112
    %v1147 = vld [vmem:[%s1146] sm:$0xff]
    %v1148 = vld [vmem:[%s1146 + $0x8] sm:$0xff]
    %v1149 = vunpack.c.l.bf16 %v1147
    %v1150 = vunpack.c.h.bf16 %v1147
    %v1151 = vunpack.c.l.bf16 %v1148
    %v1152 = vunpack.c.h.bf16 %v1148
    %v1153 = vpack.c.bf16 %v1134, %v1134
    %1154 = vmatprep.subr.bf16.mxu0 %v190
    %1155 = vmatpush1.bf16.msra.mxu0 %v189
    %1156 = vmatprep.subr.bf16.mxu0 %v194
    %1157 = vmatpush1.bf16.msra.mxu0 %v193
    %1158 = vmatprep.subr.bf16.mxu0 %v198
    %1159 = vmatpush1.bf16.msra.mxu0 %v197
    %1160 = vmatprep.subr.bf16.mxu0 %v202
    %1161 = vmatpush1.bf16.msra.mxu0 %v201
    %1162 = vmatprep.subr.bf16.mxu0 %v206
    %1163 = vmatpush1.bf16.msra.mxu0 %v205
    %1164 = vmatprep.subr.bf16.mxu0 %v210
    %1165 = vmatpush1.bf16.msra.mxu0 %v209
    %1166 = vmatprep.subr.bf16.mxu0 %v214
    %1167 = vmatpush1.bf16.msra.mxu0 %v213
    %1168 = vmatprep.subr.bf16.mxu0 %v218
    %1169 = vmatpush1.bf16.msra.mxu0 %v217
    %1170 = vmatprep.subr.bf16.mxu0 0
    %1171 = vmatpush1.bf16.msra.mxu0 0
    %1172 = vmatprep.subr.bf16.mxu0 0
    %1173 = vmatpush1.bf16.msra.mxu0 0
    %1174 = vmatprep.subr.bf16.mxu0 0
    %1175 = vmatpush1.bf16.msra.mxu0 0
    %1176 = vmatprep.subr.bf16.mxu0 0
    %1177 = vmatpush1.bf16.msra.mxu0 0
    %1178 = vmatprep.subr.bf16.mxu0 0
    %1179 = vmatpush1.bf16.msra.mxu0 0
    %1180 = vmatprep.subr.bf16.mxu0 0
    %1181 = vmatpush1.bf16.msra.mxu0 0
    %1182 = vmatprep.subr.bf16.mxu0 0
    %1183 = vmatpush1.bf16.msra.mxu0 0
    %1184 = vmatprep.subr.bf16.mxu0 0
    %1185 = vmatpush1.bf16.msra.mxu0 0
    %1186 = vmatprep.mubr.bf16.mxu0 0
    %1187 = vmatmul.mubr.bf16.gmra.mrb[0].mxu0 %v1153
    %v1188 = vpop.f32.mrb[0].mxu0
    %v1189 = vadd.f32 0.0, %v1188
    %v1190 = vpop.f32.mrb[0].mxu0
    %v1191 = vadd.f32 0.0, %v1190
    %v1192 = vpop.f32.mrb[0].mxu0
    %v1193 = vpop.f32.mrb[0].mxu0
    %1194 = vdwg.mxu0
    %1195 = vmatprep.subr.bf16.mxu0 %v192
    %1196 = vmatpush1.bf16.msra.mxu0 %v191
    %1197 = vmatprep.subr.bf16.mxu0 %v196
    %1198 = vmatpush1.bf16.msra.mxu0 %v195
    %1199 = vmatprep.subr.bf16.mxu0 %v200
    %1200 = vmatpush1.bf16.msra.mxu0 %v199
    %1201 = vmatprep.subr.bf16.mxu0 %v204
    %1202 = vmatpush1.bf16.msra.mxu0 %v203
    %1203 = vmatprep.subr.bf16.mxu0 %v208
    %1204 = vmatpush1.bf16.msra.mxu0 %v207
    %1205 = vmatprep.subr.bf16.mxu0 %v212
    %1206 = vmatpush1.bf16.msra.mxu0 %v211
    %1207 = vmatprep.subr.bf16.mxu0 %v216
    %1208 = vmatpush1.bf16.msra.mxu0 %v215
    %1209 = vmatprep.subr.bf16.mxu0 %v220
    %1210 = vmatpush1.bf16.msra.mxu0 %v219
    %1211 = vmatprep.subr.bf16.mxu0 0
    %1212 = vmatpush1.bf16.msra.mxu0 0
    %1213 = vmatprep.subr.bf16.mxu0 0
    %1214 = vmatpush1.bf16.msra.mxu0 0
    %1215 = vmatprep.subr.bf16.mxu0 0
    %1216 = vmatpush1.bf16.msra.mxu0 0
    %1217 = vmatprep.subr.bf16.mxu0 0
    %1218 = vmatpush1.bf16.msra.mxu0 0
    %1219 = vmatprep.subr.bf16.mxu0 0
    %1220 = vmatpush1.bf16.msra.mxu0 0
    %1221 = vmatprep.subr.bf16.mxu0 0
    %1222 = vmatpush1.bf16.msra.mxu0 0
    %1223 = vmatprep.subr.bf16.mxu0 0
    %1224 = vmatpush1.bf16.msra.mxu0 0
    %1225 = vmatprep.subr.bf16.mxu0 0
    %1226 = vmatpush1.bf16.msra.mxu0 0
    %1227 = vmatprep.mubr.bf16.mxu0 0
    %1228 = vmatmul.mubr.bf16.gmra.mrb[0].mxu0 %v1153
    %v1229 = vpop.f32.mrb[0].mxu0
    %v1230 = vadd.f32 0.0, %v1229
    %v1231 = vpop.f32.mrb[0].mxu0
    %v1232 = vadd.f32 0.0, %v1231
    %v1233 = vpop.f32.mrb[0].mxu0
    %v1234 = vpop.f32.mrb[0].mxu0
    %1235 = vdwg.mxu0
    %v1236 = vadd.f32 %v1149, %v1189
    %v1237 = vadd.f32 %v1150, %v1191
    %v1238 = vadd.f32 %v1151, %v1230
    %v1239 = vadd.f32 %v1152, %v1232
    %v1240 = vxor.u32 %v1236, 2147483648
    %v1241 = vxor.u32 %v1237, 2147483648
    %v1242 = vxor.u32 %v1238, 2147483648
    %v1243 = vmul.f32 %v1240, 1.442695
    %v1244 = vpow.pop %v1243
    %v1245 = vmul.f32 %v1241, 1.442695
    %v1246 = vpow.pop %v1245
    %v1247 = vmul.f32 %v1242, 1.442695
    %v1248 = vpow.pop %v1247
    %v1249 = vadd.f32 %v1244, 1.0
    %v1250 = vadd.f32 %v1246, 1.0
    %v1251 = vadd.f32 %v1248, 1.0
    %v1252 = vrcp.pop %v1249
    %v1253 = vmul.f32 1.0, %v1252
    %v1254 = vrcp.pop %v1250
    %v1255 = vmul.f32 1.0, %v1254
    %v1256 = vrcp.pop %v1251
    %v1257 = vmul.f32 1.0, %v1256
    %v1258 = vtanh.pop %v1239
    %v1259 = vmul.f32 %v1255, %v1132
    %v1260 = vmul.f32 %v1253, %v1258
    %v1261 = vadd.f32 %v1259, %v1260
    %v1262 = vtanh.pop %v1261
    %v1263 = vmul.f32 %v1257, %v1262
    %s1264 = sadd.s32 %s51, 7
    %v1265 = vstv %s1264
    %vm1266 = vcmp.lt.s32.totalorder %v1265, %v50
    %v1267 = vsel %vm1266, 1, 0
    %1268 = vset.pattern.permute.xlu0 0
    %1269 = vperm.xlu0 %1268, %v1267
    %v1270 = vpop.permute.xlu0 %1269
    %vm1271 = vcmp.eq.s32.totalorder %v1270, 1
    %v1272 = vsel %vm1271, %v1263, 0.0
    %s1273 = scalar_lea.vmem [#allocation9], 56
    %1274 = vst [vmem:[%s1273] sm:$0xff] %v1272
    %1275 = vst [vmem:[#allocation2] sm:$0xff] %v1263
    %1276 = vst [vmem:[#allocation3] sm:$0xff] %v1261
    // Predicated region
    $region26: #{tpu_custom_call.1} parent=1 // pred_check
      _
    $region27: #{tpu_custom_call.1} parent=1 // pred_check_branch
      %1278 = sbr.rel (0) target = $region29
    $region28: #{tpu_custom_call.1} parent=1 // pred_region
      %s1280 = ssub.s32 1024, 1024
      %1281 = vsyncadd [#allocation6], %s1280
      %s1282 = sshll.u32 [#allocation9], 4
      %s1283 = int_to_ptr.vmem [resolvable:$true] %s1282
      %1288 = dma.vmem_to_hbm [thread:$0]  %s1283, 1024, %s3, [#allocation6], 128, 128, 8
    $region29: #{tpu_custom_call.1} parent=1 // pred_fallthru
      _
    // Predicated region
    $region30: #{tpu_custom_call.1} parent=1 // pred_check
      _
    $region31: #{tpu_custom_call.1} parent=1 // pred_check_branch
      %1290 = sbr.rel (0) target = $region33
    $region32: #{tpu_custom_call.1} parent=1 // pred_region
      %1291 = dma.done [#allocation6], 1024
    $region33: #{tpu_custom_call.1} parent=1 // pred_fallthru
      _
    %1292 = vsyncpa [#allocation5], 1
    %1293 = vsyncpa [#allocation8], 1
    %1294 = vsyncpa [#allocation6], 1

</llo_original>
